<compile_context>
chip_gen: v5e
topology: v5e:2x2
jax: 0.10.0
libtpu: 0.0.40
codegen_flags: <defaults>
</compile_context>

<pallas_src>
import functools

import jax
import jax.numpy as jnp
from jax.experimental import pallas as pl
from jax.experimental.pallas import tpu as pltpu


def seq2seq_kernel(x_ref,          # (Bt, S, D)  f32
                   w_ih_e_ref,     # (D, 4H)     f32  encoder input -> gates (gate-stacked)
                   w_hh_e_ref,     # (H, 4H)     f32  encoder hidden -> gates
                   b_e_ref,        # (1, 4H)     f32
                   w_inp_d_ref,    # (1, 4H)     f32  decoder scalar input -> gates
                   w_ch_d_ref,     # (2H, 4H)    f32  decoder [ctx, h] -> gates (fused)
                   b_d_ref,        # (1, 4H)     f32
                   w_fc_h_ref,     # (1, H)      f32  output proj (hidden part)
                   w_fc_c_ref,     # (1, H)      f32  output proj (context part)
                   b_fc_ref,       # (1, 1)      f32
                   out_ref,        # (Bt, T)     f32
                   enc_scratch):   # (Bt, S, H)  f32  VMEM scratch for encoder states
    Bt, S, D = x_ref.shape
    H = w_hh_e_ref.shape[0]
    G = 4 * H
    T = out_ref.shape[-1]
    f32 = jnp.float32

    # Hoisted weight / bias loads.
    w_ih_e = w_ih_e_ref[...]
    w_hh_e = w_hh_e_ref[...]
    b_e = b_e_ref[...]
    w_inp_d = w_inp_d_ref[...]
    w_ch_d = w_ch_d_ref[...]
    b_d = b_d_ref[...]
    w_fc_h = w_fc_h_ref[...]
    w_fc_c = w_fc_c_ref[...]
    b_fc = b_fc_ref[...]

    x = x_ref[...]                                            # (Bt, S, D) f32

    # Packed-gate activation over one full 128-lane vreg.
    # Lane layout (gate order): [0,H)=i, [H,2H)=f, [2H,3H)=o  -> sigmoid
    #                           [3H,4H)=g (candidate)          -> tanh
    # tanh(x) == 2*sigmoid(2x) - 1, so a single full-vreg sigmoid (EUP) plus
    # hoisted VPU scale/shift covers all four gates; gates are split afterwards
    # with static 32-lane slices.
    lane = jax.lax.broadcasted_iota(jnp.int32, (1, G), 1)
    is_tanh = lane >= 3 * H
    scale2 = jnp.where(is_tanh, 2.0, 1.0).astype(f32)         # hoisted
    shift1 = jnp.where(is_tanh, -1.0, 0.0).astype(f32)        # hoisted

    def gates(pre):                                           # (Bt, 4H) -> i, f, o, g
        act = jax.nn.sigmoid(pre * scale2) * scale2 + shift1
        return (act[:, 0:H], act[:, H:2 * H],
                act[:, 2 * H:3 * H], act[:, 3 * H:4 * H])

    # ---------------- Encoder ----------------
    # Input projection (and bias) hoisted out of the recurrence: one
    # (Bt*S, D) x (D, 4H) gate-stacked matmul covers the whole sequence; only
    # h @ w_hh (one matmul per step) remains inside the loop.
    x_pre = (jnp.dot(x.reshape(Bt * S, D), w_ih_e, preferred_element_type=f32)
             + b_e).reshape(Bt, S, G)

    h = jnp.zeros((Bt, H), f32)
    c = jnp.zeros((Bt, H), f32)
    for t in range(S):                                        # fully unrolled (S small)
        pre = x_pre[:, t, :] + jnp.dot(h, w_hh_e, preferred_element_type=f32)
        i_g, f_g, o_g, g_g = gates(pre)
        c = f_g * c + i_g * g_g
        h = o_g * jnp.tanh(c)
        # Per-step VMEM scratch write instead of jnp.stack -> bounded live ranges.
        enc_scratch[:, pl.ds(t, 1), :] = h[:, None, :]

    enc = enc_scratch[...]                                    # (Bt, S, H)

    # ---------------- Decoder ----------------
    b_d_bc = jnp.broadcast_to(b_d, (Bt, G))                   # hoisted broadcast
    inp = x[:, S - 1, 0:1]                                    # x[:, -1, :1] -> (Bt, 1)
    outs = []
    for _ in range(T):                                        # fully unrolled (T small)
        # Dot-product attention on VPU/XLU slots; at S=8, H=32 batched einsums
        # would be a chain of tiny latency-bound MXU round-trips.
        scores = jnp.sum(h[:, None, :] * enc, axis=-1)        # (Bt, S) lane reduce
        m = jnp.max(scores, axis=-1, keepdims=True)
        e = jnp.exp(scores - m)
        denom = jnp.sum(e, axis=-1, keepdims=True)
        attn = e * pl.reciprocal(denom, approx=True)          # softmax, EUP vrcp
        ctx = jnp.sum(attn[:, :, None] * enc, axis=1)         # (Bt, H) sublane reduce

        # LSTM cell on [prev_output, ctx]: scalar input as a VPU outer product,
        # ctx and h fused into a single gate-stacked (Bt, 2H) x (2H, 4H) matmul.
        ctx_h = jnp.concatenate([ctx, h], axis=-1)            # (Bt, 2H)
        pre = (b_d_bc + inp * w_inp_d
               + jnp.dot(ctx_h, w_ch_d, preferred_element_type=f32))
        i_g, f_g, o_g, g_g = gates(pre)
        c = f_g * c + i_g * g_g
        h = o_g * jnp.tanh(c)

        # Output projection: VPU multiply + lane reduce (no 1-column matmul).
        out_t = jnp.sum(h * w_fc_h + ctx * w_fc_c, axis=-1, keepdims=True) + b_fc
        outs.append(out_t)
        inp = out_t

    # Single store of the whole (Bt, T) block instead of T masked stores.
    out_ref[...] = jnp.concatenate(outs, axis=-1)


def seq2seq_forward(x, params, target_len):
    """x: (B, S, D) float32. Returns (B, target_len, 1) float32."""
    B, S, D = x.shape
    H = params["w_hh_e"].shape[0]
    x = x.astype(jnp.float32)

    # Batch-grid split only when each tile keeps a multiple of 8 sublane rows;
    # at B=2 the split is pure serial overhead (the whole recurrence re-runs),
    # so use grid=(1,).  On v7x with large B the "parallel" axis is sharded
    # across the two TensorCores.
    n_bt = 2 if (B % 2 == 0 and (B // 2) % 8 == 0) else 1
    b_tile = B // n_bt

    weights = (
        params["w_ih_e"],
        params["w_hh_e"],
        params["b_e"],
        params["w_inp_d"],
        params["w_ch_d"],
        params["b_d"],
        params["w_fc_h"],
        params["w_fc_c"],
        params["b_fc"],
    )

    def _full_spec(a):
        nd = a.ndim
        return pl.BlockSpec(a.shape, lambda b, _nd=nd: (0,) * _nd)

    in_specs = [pl.BlockSpec((b_tile, S, D), lambda b: (b, 0, 0))]
    in_specs += [_full_spec(w) for w in weights]

    out = pl.pallas_call(
        seq2seq_kernel,
        out_shape=jax.ShapeDtypeStruct((B, target_len), jnp.float32),
        grid=(n_bt,),
        in_specs=in_specs,
        out_specs=pl.BlockSpec((b_tile, target_len), lambda b: (b, 0)),
        scratch_shapes=[pltpu.VMEM((b_tile, S, H), jnp.float32)],
        compiler_params=pltpu.CompilerParams(
            dimension_semantics=("parallel",),
            vmem_limit_bytes=32 * 1024 * 1024,
        ),
    )(x, *weights)

    return out[..., None]                                     # (B, T, 1)


def init_params(key, D, H):
    """Deterministic synthetic parameters, gate-stacked along the lane axis.

    Gate lane layout in every (in, 4H) weight / (1, 4H) bias: [i | f | o | g].
    """
    ks = jax.random.split(key, 9)
    scale = 1.0 / jnp.sqrt(jnp.float32(H))

    def u(k, shape):
        return jax.random.uniform(k, shape, jnp.float32, -scale, scale)

    return {
        # encoder LSTM (input D -> hidden H), gate-stacked
        "w_ih_e": u(ks[0], (D, 4 * H)),
        "w_hh_e": u(ks[1], (H, 4 * H)),
        "b_e":    u(ks[2], (1, 4 * H)),
        # decoder LSTM cell on [prev_output(1), context(H)] with hidden h(H);
        # ctx and h weights fused along the contraction axis: rows [0,H)=ctx, [H,2H)=h
        "w_inp_d": u(ks[3], (1, 4 * H)),
        "w_ch_d":  u(ks[4], (2 * H, 4 * H)),
        "b_d":     u(ks[5], (1, 4 * H)),
        # output projection on [h(H), context(H)] -> 1 (split row weights)
        "w_fc_h": u(ks[6], (1, H)),
        "w_fc_c": u(ks[7], (1, H)),
        "b_fc":   u(ks[8], (1, 1)),
    }


if __name__ == "__main__":
    B, S, D, H = 2, 8, 4, 32
    TARGET_LEN = 6

    key = jax.random.PRNGKey(0)
    k_x, k_p = jax.random.split(key)
    x = jax.random.normal(k_x, (B, S, D), jnp.float32)
    params = init_params(k_p, D, H)

    fwd = jax.jit(functools.partial(seq2seq_forward, target_len=TARGET_LEN))
    out = fwd(x, params)
    jax.block_until_ready(out)

    assert out.shape == (B, TARGET_LEN, 1), out.shape
    assert out.dtype == jnp.float32
    assert bool(jnp.all(jnp.isfinite(out)))
    print("KERNEL_OK")
</pallas_src>

<mosaic_0001>
module attributes {stable_mosaic.version = 11 : i64} {
  func.func @seq2seq_kernel(%arg0: i32, %arg1: memref<2x8x4xf32, #tpu.memory_space<vmem>>, %arg2: memref<4x128xf32, #tpu.memory_space<vmem>>, %arg3: memref<32x128xf32, #tpu.memory_space<vmem>>, %arg4: memref<1x128xf32, #tpu.memory_space<vmem>>, %arg5: memref<1x128xf32, #tpu.memory_space<vmem>>, %arg6: memref<64x128xf32, #tpu.memory_space<vmem>>, %arg7: memref<1x128xf32, #tpu.memory_space<vmem>>, %arg8: memref<1x32xf32, #tpu.memory_space<vmem>>, %arg9: memref<1x32xf32, #tpu.memory_space<vmem>>, %arg10: memref<1x1xf32, #tpu.memory_space<vmem>>, %arg11: memref<2x6xf32, #tpu.memory_space<vmem>>, %arg12: memref<2x8x32xf32, #tpu.memory_space<vmem>>) attributes {dimension_semantics = [#tpu.dimension_semantics<parallel>], iteration_bounds = array<i64: 1>, scalar_prefetch = 0 : i64, scratch_operands = 1 : i64, tpu.core_type = #tpu.core_type<tc>, window_params = [{transform_indices = @transform_0, window_bounds = array<i64: 2, 8, 4>}, {pipeline_mode = #tpu.pipeline_mode<synchronous>, transform_indices = @transform_1, window_bounds = array<i64: 4, 128>}, {pipeline_mode = #tpu.pipeline_mode<synchronous>, transform_indices = @transform_2, window_bounds = array<i64: 32, 128>}, {pipeline_mode = #tpu.pipeline_mode<synchronous>, transform_indices = @transform_3, window_bounds = array<i64: 1, 128>}, {pipeline_mode = #tpu.pipeline_mode<synchronous>, transform_indices = @transform_4, window_bounds = array<i64: 1, 128>}, {pipeline_mode = #tpu.pipeline_mode<synchronous>, transform_indices = @transform_5, window_bounds = array<i64: 64, 128>}, {pipeline_mode = #tpu.pipeline_mode<synchronous>, transform_indices = @transform_6, window_bounds = array<i64: 1, 128>}, {pipeline_mode = #tpu.pipeline_mode<synchronous>, transform_indices = @transform_7, window_bounds = array<i64: 1, 32>}, {pipeline_mode = #tpu.pipeline_mode<synchronous>, transform_indices = @transform_8, window_bounds = array<i64: 1, 32>}, {pipeline_mode = #tpu.pipeline_mode<synchronous>, transform_indices = @transform_9, window_bounds = array<i64: 1, 1>}, {transform_indices = @transform_10, window_bounds = array<i64: 2, 6>}]} {
    %c0 = arith.constant 0 : index
    %c0_0 = arith.constant 0 : index
    %0 = vector.load %arg2[%c0, %c0_0] : memref<4x128xf32, #tpu.memory_space<vmem>>, vector<4x128xf32>
    %c0_1 = arith.constant 0 : index
    %c0_2 = arith.constant 0 : index
    %1 = vector.load %arg3[%c0_1, %c0_2] : memref<32x128xf32, #tpu.memory_space<vmem>>, vector<32x128xf32>
    %c0_3 = arith.constant 0 : index
    %c0_4 = arith.constant 0 : index
    %2 = vector.load %arg4[%c0_3, %c0_4] : memref<1x128xf32, #tpu.memory_space<vmem>>, vector<1x128xf32>
    %c0_5 = arith.constant 0 : index
    %c0_6 = arith.constant 0 : index
    %3 = vector.load %arg5[%c0_5, %c0_6] : memref<1x128xf32, #tpu.memory_space<vmem>>, vector<1x128xf32>
    %c0_7 = arith.constant 0 : index
    %c0_8 = arith.constant 0 : index
    %4 = vector.load %arg6[%c0_7, %c0_8] : memref<64x128xf32, #tpu.memory_space<vmem>>, vector<64x128xf32>
    %c0_9 = arith.constant 0 : index
    %c0_10 = arith.constant 0 : index
    %5 = vector.load %arg7[%c0_9, %c0_10] : memref<1x128xf32, #tpu.memory_space<vmem>>, vector<1x128xf32>
    %c0_11 = arith.constant 0 : index
    %c0_12 = arith.constant 0 : index
    %6 = vector.load %arg8[%c0_11, %c0_12] : memref<1x32xf32, #tpu.memory_space<vmem>>, vector<1x32xf32>
    %c0_13 = arith.constant 0 : index
    %c0_14 = arith.constant 0 : index
    %7 = vector.load %arg9[%c0_13, %c0_14] : memref<1x32xf32, #tpu.memory_space<vmem>>, vector<1x32xf32>
    %c0_15 = arith.constant 0 : index
    %c0_16 = arith.constant 0 : index
    %8 = vector.load %arg10[%c0_15, %c0_16] : memref<1x1xf32, #tpu.memory_space<vmem>>, vector<1x1xf32>
    %c0_17 = arith.constant 0 : index
    %c0_18 = arith.constant 0 : index
    %c0_19 = arith.constant 0 : index
    %9 = vector.load %arg1[%c0_17, %c0_18, %c0_19] : memref<2x8x4xf32, #tpu.memory_space<vmem>>, vector<2x8x4xf32>
    %10 = tpu.iota {dimensions = array<i32: 1>} : vector<1x128xi32>
    %c96_i32 = arith.constant 96 : i32
    %11 = vector.broadcast %c96_i32 : i32 to vector<1x128xi32>
    %12 = arith.cmpi sge, %10, %11 : vector<1x128xi32>
    %cst = arith.constant 2.000000e+00 : f32
    %cst_20 = arith.constant 1.000000e+00 : f32
    %13 = vector.broadcast %cst : f32 to vector<1x128xf32>
    %14 = vector.broadcast %cst_20 : f32 to vector<1x128xf32>
    %15 = arith.select %12, %13, %14 : vector<1x128xi1>, vector<1x128xf32>
    %cst_21 = arith.constant -1.000000e+00 : f32
    %cst_22 = arith.constant 0.000000e+00 : f32
    %16 = vector.broadcast %cst_21 : f32 to vector<1x128xf32>
    %17 = vector.broadcast %cst_22 : f32 to vector<1x128xf32>
    %18 = arith.select %12, %16, %17 : vector<1x128xi1>, vector<1x128xf32>
    %19 = vector.shape_cast %9 : vector<2x8x4xf32> to vector<16x4xf32>
    %cst_23 = arith.constant dense<0.000000e+00> : vector<16x128xf32>
    %20 = tpu.matmul %19, %0, %cst_23 {dimension_numbers = #tpu.dot_dimension_numbers<[1], [0], [0], [1], [0, 0, 1, 1], [], []>} : vector<16x4xf32>, vector<4x128xf32>, vector<16x128xf32> -> vector<16x128xf32>
    %21 = vector.broadcast %2 : vector<1x128xf32> to vector<16x128xf32>
    %22 = arith.addf %20, %21 : vector<16x128xf32>
    %23 = vector.shape_cast %22 : vector<16x128xf32> to vector<2x8x128xf32>
    %cst_24 = arith.constant 0.000000e+00 : f32
    %24 = vector.broadcast %cst_24 : f32 to vector<2x32xf32>
    %cst_25 = arith.constant 0.000000e+00 : f32
    %25 = vector.broadcast %cst_25 : f32 to vector<2x32xf32>
    %26 = vector.extract_strided_slice %23 {offsets = [0, 0, 0], sizes = [2, 1, 128], strides = [1, 1, 1]} : vector<2x8x128xf32> to vector<2x1x128xf32>
    %27 = vector.shape_cast %26 : vector<2x1x128xf32> to vector<2x128xf32>
    %cst_26 = arith.constant dense<0.000000e+00> : vector<2x128xf32>
    %28 = tpu.matmul %24, %1, %cst_26 {dimension_numbers = #tpu.dot_dimension_numbers<[1], [0], [0], [1], [0, 0, 1, 1], [], []>} : vector<2x32xf32>, vector<32x128xf32>, vector<2x128xf32> -> vector<2x128xf32>
    %29 = arith.addf %27, %28 : vector<2x128xf32>
    %30 = vector.broadcast %15 : vector<1x128xf32> to vector<2x128xf32>
    %31 = arith.mulf %29, %30 : vector<2x128xf32>
    %32 = arith.negf %31 : vector<2x128xf32>
    %33 = math.exp %32 : vector<2x128xf32>
    %cst_27 = arith.constant 1.000000e+00 : f32
    %34 = vector.broadcast %cst_27 : f32 to vector<2x128xf32>
    %35 = arith.addf %34, %33 : vector<2x128xf32>
    %36 = arith.divf %34, %35 : vector<2x128xf32>
    %37 = vector.broadcast %15 : vector<1x128xf32> to vector<2x128xf32>
    %38 = arith.mulf %36, %37 : vector<2x128xf32>
    %39 = vector.broadcast %18 : vector<1x128xf32> to vector<2x128xf32>
    %40 = arith.addf %38, %39 : vector<2x128xf32>
    %41 = vector.extract_strided_slice %40 {offsets = [0, 0], sizes = [2, 32], strides = [1, 1]} : vector<2x128xf32> to vector<2x32xf32>
    %42 = vector.extract_strided_slice %40 {offsets = [0, 32], sizes = [2, 32], strides = [1, 1]} : vector<2x128xf32> to vector<2x32xf32>
    %43 = vector.extract_strided_slice %40 {offsets = [0, 64], sizes = [2, 32], strides = [1, 1]} : vector<2x128xf32> to vector<2x32xf32>
    %44 = vector.extract_strided_slice %40 {offsets = [0, 96], sizes = [2, 32], strides = [1, 1]} : vector<2x128xf32> to vector<2x32xf32>
    %45 = arith.mulf %42, %25 : vector<2x32xf32>
    %46 = arith.mulf %41, %44 : vector<2x32xf32>
    %47 = arith.addf %45, %46 : vector<2x32xf32>
    %48 = math.tanh %47 : vector<2x32xf32>
    %49 = arith.mulf %43, %48 : vector<2x32xf32>
    %50 = vector.shape_cast %49 : vector<2x32xf32> to vector<2x1x32xf32>
    %c0_28 = arith.constant 0 : index
    %c0_29 = arith.constant 0 : index
    %c0_30 = arith.constant 0 : index
    %51 = vector.load %arg12[%c0_28, %c0_29, %c0_30] : memref<2x8x32xf32, #tpu.memory_space<vmem>>, vector<2x1x32xf32>
    tpu.vector_store %arg12[%c0_28, %c0_29, %c0_30], %50 {strides = array<i32>} : memref<2x8x32xf32, #tpu.memory_space<vmem>>, vector<2x1x32xf32>,
    %52 = vector.extract_strided_slice %23 {offsets = [0, 1, 0], sizes = [2, 1, 128], strides = [1, 1, 1]} : vector<2x8x128xf32> to vector<2x1x128xf32>
    %53 = vector.shape_cast %52 : vector<2x1x128xf32> to vector<2x128xf32>
    %cst_31 = arith.constant dense<0.000000e+00> : vector<2x128xf32>
    %54 = tpu.matmul %49, %1, %cst_31 {dimension_numbers = #tpu.dot_dimension_numbers<[1], [0], [0], [1], [0, 0, 1, 1], [], []>} : vector<2x32xf32>, vector<32x128xf32>, vector<2x128xf32> -> vector<2x128xf32>
    %55 = arith.addf %53, %54 : vector<2x128xf32>
    %56 = vector.broadcast %15 : vector<1x128xf32> to vector<2x128xf32>
    %57 = arith.mulf %55, %56 : vector<2x128xf32>
    %58 = arith.negf %57 : vector<2x128xf32>
    %59 = math.exp %58 : vector<2x128xf32>
    %cst_32 = arith.constant 1.000000e+00 : f32
    %60 = vector.broadcast %cst_32 : f32 to vector<2x128xf32>
    %61 = arith.addf %60, %59 : vector<2x128xf32>
    %62 = arith.divf %60, %61 : vector<2x128xf32>
    %63 = vector.broadcast %15 : vector<1x128xf32> to vector<2x128xf32>
    %64 = arith.mulf %62, %63 : vector<2x128xf32>
    %65 = vector.broadcast %18 : vector<1x128xf32> to vector<2x128xf32>
    %66 = arith.addf %64, %65 : vector<2x128xf32>
    %67 = vector.extract_strided_slice %66 {offsets = [0, 0], sizes = [2, 32], strides = [1, 1]} : vector<2x128xf32> to vector<2x32xf32>
    %68 = vector.extract_strided_slice %66 {offsets = [0, 32], sizes = [2, 32], strides = [1, 1]} : vector<2x128xf32> to vector<2x32xf32>
    %69 = vector.extract_strided_slice %66 {offsets = [0, 64], sizes = [2, 32], strides = [1, 1]} : vector<2x128xf32> to vector<2x32xf32>
    %70 = vector.extract_strided_slice %66 {offsets = [0, 96], sizes = [2, 32], strides = [1, 1]} : vector<2x128xf32> to vector<2x32xf32>
    %71 = arith.mulf %68, %47 : vector<2x32xf32>
    %72 = arith.mulf %67, %70 : vector<2x32xf32>
    %73 = arith.addf %71, %72 : vector<2x32xf32>
    %74 = math.tanh %73 : vector<2x32xf32>
    %75 = arith.mulf %69, %74 : vector<2x32xf32>
    %76 = vector.shape_cast %75 : vector<2x32xf32> to vector<2x1x32xf32>
    %c0_33 = arith.constant 0 : index
    %c1 = arith.constant 1 : index
    %c0_34 = arith.constant 0 : index
    %77 = vector.load %arg12[%c0_33, %c1, %c0_34] : memref<2x8x32xf32, #tpu.memory_space<vmem>>, vector<2x1x32xf32>
    tpu.vector_store %arg12[%c0_33, %c1, %c0_34], %76 {strides = array<i32>} : memref<2x8x32xf32, #tpu.memory_space<vmem>>, vector<2x1x32xf32>,
    %78 = vector.extract_strided_slice %23 {offsets = [0, 2, 0], sizes = [2, 1, 128], strides = [1, 1, 1]} : vector<2x8x128xf32> to vector<2x1x128xf32>
    %79 = vector.shape_cast %78 : vector<2x1x128xf32> to vector<2x128xf32>
    %cst_35 = arith.constant dense<0.000000e+00> : vector<2x128xf32>
    %80 = tpu.matmul %75, %1, %cst_35 {dimension_numbers = #tpu.dot_dimension_numbers<[1], [0], [0], [1], [0, 0, 1, 1], [], []>} : vector<2x32xf32>, vector<32x128xf32>, vector<2x128xf32> -> vector<2x128xf32>
    %81 = arith.addf %79, %80 : vector<2x128xf32>
    %82 = vector.broadcast %15 : vector<1x128xf32> to vector<2x128xf32>
    %83 = arith.mulf %81, %82 : vector<2x128xf32>
    %84 = arith.negf %83 : vector<2x128xf32>
    %85 = math.exp %84 : vector<2x128xf32>
    %cst_36 = arith.constant 1.000000e+00 : f32
    %86 = vector.broadcast %cst_36 : f32 to vector<2x128xf32>
    %87 = arith.addf %86, %85 : vector<2x128xf32>
    %88 = arith.divf %86, %87 : vector<2x128xf32>
    %89 = vector.broadcast %15 : vector<1x128xf32> to vector<2x128xf32>
    %90 = arith.mulf %88, %89 : vector<2x128xf32>
    %91 = vector.broadcast %18 : vector<1x128xf32> to vector<2x128xf32>
    %92 = arith.addf %90, %91 : vector<2x128xf32>
    %93 = vector.extract_strided_slice %92 {offsets = [0, 0], sizes = [2, 32], strides = [1, 1]} : vector<2x128xf32> to vector<2x32xf32>
    %94 = vector.extract_strided_slice %92 {offsets = [0, 32], sizes = [2, 32], strides = [1, 1]} : vector<2x128xf32> to vector<2x32xf32>
    %95 = vector.extract_strided_slice %92 {offsets = [0, 64], sizes = [2, 32], strides = [1, 1]} : vector<2x128xf32> to vector<2x32xf32>
    %96 = vector.extract_strided_slice %92 {offsets = [0, 96], sizes = [2, 32], strides = [1, 1]} : vector<2x128xf32> to vector<2x32xf32>
    %97 = arith.mulf %94, %73 : vector<2x32xf32>
    %98 = arith.mulf %93, %96 : vector<2x32xf32>
    %99 = arith.addf %97, %98 : vector<2x32xf32>
    %100 = math.tanh %99 : vector<2x32xf32>
    %101 = arith.mulf %95, %100 : vector<2x32xf32>
    %102 = vector.shape_cast %101 : vector<2x32xf32> to vector<2x1x32xf32>
    %c0_37 = arith.constant 0 : index
    %c2 = arith.constant 2 : index
    %c0_38 = arith.constant 0 : index
    %103 = vector.load %arg12[%c0_37, %c2, %c0_38] : memref<2x8x32xf32, #tpu.memory_space<vmem>>, vector<2x1x32xf32>
    tpu.vector_store %arg12[%c0_37, %c2, %c0_38], %102 {strides = array<i32>} : memref<2x8x32xf32, #tpu.memory_space<vmem>>, vector<2x1x32xf32>,
    %104 = vector.extract_strided_slice %23 {offsets = [0, 3, 0], sizes = [2, 1, 128], strides = [1, 1, 1]} : vector<2x8x128xf32> to vector<2x1x128xf32>
    %105 = vector.shape_cast %104 : vector<2x1x128xf32> to vector<2x128xf32>
    %cst_39 = arith.constant dense<0.000000e+00> : vector<2x128xf32>
    %106 = tpu.matmul %101, %1, %cst_39 {dimension_numbers = #tpu.dot_dimension_numbers<[1], [0], [0], [1], [0, 0, 1, 1], [], []>} : vector<2x32xf32>, vector<32x128xf32>, vector<2x128xf32> -> vector<2x128xf32>
    %107 = arith.addf %105, %106 : vector<2x128xf32>
    %108 = vector.broadcast %15 : vector<1x128xf32> to vector<2x128xf32>
    %109 = arith.mulf %107, %108 : vector<2x128xf32>
    %110 = arith.negf %109 : vector<2x128xf32>
    %111 = math.exp %110 : vector<2x128xf32>
    %cst_40 = arith.constant 1.000000e+00 : f32
    %112 = vector.broadcast %cst_40 : f32 to vector<2x128xf32>
    %113 = arith.addf %112, %111 : vector<2x128xf32>
    %114 = arith.divf %112, %113 : vector<2x128xf32>
    %115 = vector.broadcast %15 : vector<1x128xf32> to vector<2x128xf32>
    %116 = arith.mulf %114, %115 : vector<2x128xf32>
    %117 = vector.broadcast %18 : vector<1x128xf32> to vector<2x128xf32>
    %118 = arith.addf %116, %117 : vector<2x128xf32>
    %119 = vector.extract_strided_slice %118 {offsets = [0, 0], sizes = [2, 32], strides = [1, 1]} : vector<2x128xf32> to vector<2x32xf32>
    %120 = vector.extract_strided_slice %118 {offsets = [0, 32], sizes = [2, 32], strides = [1, 1]} : vector<2x128xf32> to vector<2x32xf32>
    %121 = vector.extract_strided_slice %118 {offsets = [0, 64], sizes = [2, 32], strides = [1, 1]} : vector<2x128xf32> to vector<2x32xf32>
    %122 = vector.extract_strided_slice %118 {offsets = [0, 96], sizes = [2, 32], strides = [1, 1]} : vector<2x128xf32> to vector<2x32xf32>
    %123 = arith.mulf %120, %99 : vector<2x32xf32>
    %124 = arith.mulf %119, %122 : vector<2x32xf32>
    %125 = arith.addf %123, %124 : vector<2x32xf32>
    %126 = math.tanh %125 : vector<2x32xf32>
    %127 = arith.mulf %121, %126 : vector<2x32xf32>
    %128 = vector.shape_cast %127 : vector<2x32xf32> to vector<2x1x32xf32>
    %c0_41 = arith.constant 0 : index
    %c3 = arith.constant 3 : index
    %c0_42 = arith.constant 0 : index
    %129 = vector.load %arg12[%c0_41, %c3, %c0_42] : memref<2x8x32xf32, #tpu.memory_space<vmem>>, vector<2x1x32xf32>
    tpu.vector_store %arg12[%c0_41, %c3, %c0_42], %128 {strides = array<i32>} : memref<2x8x32xf32, #tpu.memory_space<vmem>>, vector<2x1x32xf32>,
    %130 = vector.extract_strided_slice %23 {offsets = [0, 4, 0], sizes = [2, 1, 128], strides = [1, 1, 1]} : vector<2x8x128xf32> to vector<2x1x128xf32>
    %131 = vector.shape_cast %130 : vector<2x1x128xf32> to vector<2x128xf32>
    %cst_43 = arith.constant dense<0.000000e+00> : vector<2x128xf32>
    %132 = tpu.matmul %127, %1, %cst_43 {dimension_numbers = #tpu.dot_dimension_numbers<[1], [0], [0], [1], [0, 0, 1, 1], [], []>} : vector<2x32xf32>, vector<32x128xf32>, vector<2x128xf32> -> vector<2x128xf32>
    %133 = arith.addf %131, %132 : vector<2x128xf32>
    %134 = vector.broadcast %15 : vector<1x128xf32> to vector<2x128xf32>
    %135 = arith.mulf %133, %134 : vector<2x128xf32>
    %136 = arith.negf %135 : vector<2x128xf32>
    %137 = math.exp %136 : vector<2x128xf32>
    %cst_44 = arith.constant 1.000000e+00 : f32
    %138 = vector.broadcast %cst_44 : f32 to vector<2x128xf32>
    %139 = arith.addf %138, %137 : vector<2x128xf32>
    %140 = arith.divf %138, %139 : vector<2x128xf32>
    %141 = vector.broadcast %15 : vector<1x128xf32> to vector<2x128xf32>
    %142 = arith.mulf %140, %141 : vector<2x128xf32>
    %143 = vector.broadcast %18 : vector<1x128xf32> to vector<2x128xf32>
    %144 = arith.addf %142, %143 : vector<2x128xf32>
    %145 = vector.extract_strided_slice %144 {offsets = [0, 0], sizes = [2, 32], strides = [1, 1]} : vector<2x128xf32> to vector<2x32xf32>
    %146 = vector.extract_strided_slice %144 {offsets = [0, 32], sizes = [2, 32], strides = [1, 1]} : vector<2x128xf32> to vector<2x32xf32>
    %147 = vector.extract_strided_slice %144 {offsets = [0, 64], sizes = [2, 32], strides = [1, 1]} : vector<2x128xf32> to vector<2x32xf32>
    %148 = vector.extract_strided_slice %144 {offsets = [0, 96], sizes = [2, 32], strides = [1, 1]} : vector<2x128xf32> to vector<2x32xf32>
    %149 = arith.mulf %146, %125 : vector<2x32xf32>
    %150 = arith.mulf %145, %148 : vector<2x32xf32>
    %151 = arith.addf %149, %150 : vector<2x32xf32>
    %152 = math.tanh %151 : vector<2x32xf32>
    %153 = arith.mulf %147, %152 : vector<2x32xf32>
    %154 = vector.shape_cast %153 : vector<2x32xf32> to vector<2x1x32xf32>
    %c0_45 = arith.constant 0 : index
    %c4 = arith.constant 4 : index
    %c0_46 = arith.constant 0 : index
    %155 = vector.load %arg12[%c0_45, %c4, %c0_46] : memref<2x8x32xf32, #tpu.memory_space<vmem>>, vector<2x1x32xf32>
    tpu.vector_store %arg12[%c0_45, %c4, %c0_46], %154 {strides = array<i32>} : memref<2x8x32xf32, #tpu.memory_space<vmem>>, vector<2x1x32xf32>,
    %156 = vector.extract_strided_slice %23 {offsets = [0, 5, 0], sizes = [2, 1, 128], strides = [1, 1, 1]} : vector<2x8x128xf32> to vector<2x1x128xf32>
    %157 = vector.shape_cast %156 : vector<2x1x128xf32> to vector<2x128xf32>
    %cst_47 = arith.constant dense<0.000000e+00> : vector<2x128xf32>
    %158 = tpu.matmul %153, %1, %cst_47 {dimension_numbers = #tpu.dot_dimension_numbers<[1], [0], [0], [1], [0, 0, 1, 1], [], []>} : vector<2x32xf32>, vector<32x128xf32>, vector<2x128xf32> -> vector<2x128xf32>
    %159 = arith.addf %157, %158 : vector<2x128xf32>
    %160 = vector.broadcast %15 : vector<1x128xf32> to vector<2x128xf32>
    %161 = arith.mulf %159, %160 : vector<2x128xf32>
    %162 = arith.negf %161 : vector<2x128xf32>
    %163 = math.exp %162 : vector<2x128xf32>
    %cst_48 = arith.constant 1.000000e+00 : f32
    %164 = vector.broadcast %cst_48 : f32 to vector<2x128xf32>
    %165 = arith.addf %164, %163 : vector<2x128xf32>
    %166 = arith.divf %164, %165 : vector<2x128xf32>
    %167 = vector.broadcast %15 : vector<1x128xf32> to vector<2x128xf32>
    %168 = arith.mulf %166, %167 : vector<2x128xf32>
    %169 = vector.broadcast %18 : vector<1x128xf32> to vector<2x128xf32>
    %170 = arith.addf %168, %169 : vector<2x128xf32>
    %171 = vector.extract_strided_slice %170 {offsets = [0, 0], sizes = [2, 32], strides = [1, 1]} : vector<2x128xf32> to vector<2x32xf32>
    %172 = vector.extract_strided_slice %170 {offsets = [0, 32], sizes = [2, 32], strides = [1, 1]} : vector<2x128xf32> to vector<2x32xf32>
    %173 = vector.extract_strided_slice %170 {offsets = [0, 64], sizes = [2, 32], strides = [1, 1]} : vector<2x128xf32> to vector<2x32xf32>
    %174 = vector.extract_strided_slice %170 {offsets = [0, 96], sizes = [2, 32], strides = [1, 1]} : vector<2x128xf32> to vector<2x32xf32>
    %175 = arith.mulf %172, %151 : vector<2x32xf32>
    %176 = arith.mulf %171, %174 : vector<2x32xf32>
    %177 = arith.addf %175, %176 : vector<2x32xf32>
    %178 = math.tanh %177 : vector<2x32xf32>
    %179 = arith.mulf %173, %178 : vector<2x32xf32>
    %180 = vector.shape_cast %179 : vector<2x32xf32> to vector<2x1x32xf32>
    %c0_49 = arith.constant 0 : index
    %c5 = arith.constant 5 : index
    %c0_50 = arith.constant 0 : index
    %181 = vector.load %arg12[%c0_49, %c5, %c0_50] : memref<2x8x32xf32, #tpu.memory_space<vmem>>, vector<2x1x32xf32>
    tpu.vector_store %arg12[%c0_49, %c5, %c0_50], %180 {strides = array<i32>} : memref<2x8x32xf32, #tpu.memory_space<vmem>>, vector<2x1x32xf32>,
    %182 = vector.extract_strided_slice %23 {offsets = [0, 6, 0], sizes = [2, 1, 128], strides = [1, 1, 1]} : vector<2x8x128xf32> to vector<2x1x128xf32>
    %183 = vector.shape_cast %182 : vector<2x1x128xf32> to vector<2x128xf32>
    %cst_51 = arith.constant dense<0.000000e+00> : vector<2x128xf32>
    %184 = tpu.matmul %179, %1, %cst_51 {dimension_numbers = #tpu.dot_dimension_numbers<[1], [0], [0], [1], [0, 0, 1, 1], [], []>} : vector<2x32xf32>, vector<32x128xf32>, vector<2x128xf32> -> vector<2x128xf32>
    %185 = arith.addf %183, %184 : vector<2x128xf32>
    %186 = vector.broadcast %15 : vector<1x128xf32> to vector<2x128xf32>
    %187 = arith.mulf %185, %186 : vector<2x128xf32>
    %188 = arith.negf %187 : vector<2x128xf32>
    %189 = math.exp %188 : vector<2x128xf32>
    %cst_52 = arith.constant 1.000000e+00 : f32
    %190 = vector.broadcast %cst_52 : f32 to vector<2x128xf32>
    %191 = arith.addf %190, %189 : vector<2x128xf32>
    %192 = arith.divf %190, %191 : vector<2x128xf32>
    %193 = vector.broadcast %15 : vector<1x128xf32> to vector<2x128xf32>
    %194 = arith.mulf %192, %193 : vector<2x128xf32>
    %195 = vector.broadcast %18 : vector<1x128xf32> to vector<2x128xf32>
    %196 = arith.addf %194, %195 : vector<2x128xf32>
    %197 = vector.extract_strided_slice %196 {offsets = [0, 0], sizes = [2, 32], strides = [1, 1]} : vector<2x128xf32> to vector<2x32xf32>
    %198 = vector.extract_strided_slice %196 {offsets = [0, 32], sizes = [2, 32], strides = [1, 1]} : vector<2x128xf32> to vector<2x32xf32>
    %199 = vector.extract_strided_slice %196 {offsets = [0, 64], sizes = [2, 32], strides = [1, 1]} : vector<2x128xf32> to vector<2x32xf32>
    %200 = vector.extract_strided_slice %196 {offsets = [0, 96], sizes = [2, 32], strides = [1, 1]} : vector<2x128xf32> to vector<2x32xf32>
    %201 = arith.mulf %198, %177 : vector<2x32xf32>
    %202 = arith.mulf %197, %200 : vector<2x32xf32>
    %203 = arith.addf %201, %202 : vector<2x32xf32>
    %204 = math.tanh %203 : vector<2x32xf32>
    %205 = arith.mulf %199, %204 : vector<2x32xf32>
    %206 = vector.shape_cast %205 : vector<2x32xf32> to vector<2x1x32xf32>
    %c0_53 = arith.constant 0 : index
    %c6 = arith.constant 6 : index
    %c0_54 = arith.constant 0 : index
    %207 = vector.load %arg12[%c0_53, %c6, %c0_54] : memref<2x8x32xf32, #tpu.memory_space<vmem>>, vector<2x1x32xf32>
    tpu.vector_store %arg12[%c0_53, %c6, %c0_54], %206 {strides = array<i32>} : memref<2x8x32xf32, #tpu.memory_space<vmem>>, vector<2x1x32xf32>,
    %208 = vector.extract_strided_slice %23 {offsets = [0, 7, 0], sizes = [2, 1, 128], strides = [1, 1, 1]} : vector<2x8x128xf32> to vector<2x1x128xf32>
    %209 = vector.shape_cast %208 : vector<2x1x128xf32> to vector<2x128xf32>
    %cst_55 = arith.constant dense<0.000000e+00> : vector<2x128xf32>
    %210 = tpu.matmul %205, %1, %cst_55 {dimension_numbers = #tpu.dot_dimension_numbers<[1], [0], [0], [1], [0, 0, 1, 1], [], []>} : vector<2x32xf32>, vector<32x128xf32>, vector<2x128xf32> -> vector<2x128xf32>
    %211 = arith.addf %209, %210 : vector<2x128xf32>
    %212 = vector.broadcast %15 : vector<1x128xf32> to vector<2x128xf32>
    %213 = arith.mulf %211, %212 : vector<2x128xf32>
    %214 = arith.negf %213 : vector<2x128xf32>
    %215 = math.exp %214 : vector<2x128xf32>
    %cst_56 = arith.constant 1.000000e+00 : f32
    %216 = vector.broadcast %cst_56 : f32 to vector<2x128xf32>
    %217 = arith.addf %216, %215 : vector<2x128xf32>
    %218 = arith.divf %216, %217 : vector<2x128xf32>
    %219 = vector.broadcast %15 : vector<1x128xf32> to vector<2x128xf32>
    %220 = arith.mulf %218, %219 : vector<2x128xf32>
    %221 = vector.broadcast %18 : vector<1x128xf32> to vector<2x128xf32>
    %222 = arith.addf %220, %221 : vector<2x128xf32>
    %223 = vector.extract_strided_slice %222 {offsets = [0, 0], sizes = [2, 32], strides = [1, 1]} : vector<2x128xf32> to vector<2x32xf32>
    %224 = vector.extract_strided_slice %222 {offsets = [0, 32], sizes = [2, 32], strides = [1, 1]} : vector<2x128xf32> to vector<2x32xf32>
    %225 = vector.extract_strided_slice %222 {offsets = [0, 64], sizes = [2, 32], strides = [1, 1]} : vector<2x128xf32> to vector<2x32xf32>
    %226 = vector.extract_strided_slice %222 {offsets = [0, 96], sizes = [2, 32], strides = [1, 1]} : vector<2x128xf32> to vector<2x32xf32>
    %227 = arith.mulf %224, %203 : vector<2x32xf32>
    %228 = arith.mulf %223, %226 : vector<2x32xf32>
    %229 = arith.addf %227, %228 : vector<2x32xf32>
    %230 = math.tanh %229 : vector<2x32xf32>
    %231 = arith.mulf %225, %230 : vector<2x32xf32>
    %232 = vector.shape_cast %231 : vector<2x32xf32> to vector<2x1x32xf32>
    %c0_57 = arith.constant 0 : index
    %c7 = arith.constant 7 : index
    %c0_58 = arith.constant 0 : index
    %233 = vector.load %arg12[%c0_57, %c7, %c0_58] : memref<2x8x32xf32, #tpu.memory_space<vmem>>, vector<2x1x32xf32>
    tpu.vector_store %arg12[%c0_57, %c7, %c0_58], %232 {strides = array<i32>} : memref<2x8x32xf32, #tpu.memory_space<vmem>>, vector<2x1x32xf32>,
    %c0_59 = arith.constant 0 : index
    %c0_60 = arith.constant 0 : index
    %c0_61 = arith.constant 0 : index
    %234 = vector.load %arg12[%c0_59, %c0_60, %c0_61] : memref<2x8x32xf32, #tpu.memory_space<vmem>>, vector<2x8x32xf32>
    %235 = vector.shape_cast %5 : vector<1x128xf32> to vector<1x128xf32>
    %236 = vector.broadcast %235 : vector<1x128xf32> to vector<2x128xf32>
    %237 = vector.extract_strided_slice %9 {offsets = [0, 7, 0], sizes = [2, 1, 1], strides = [1, 1, 1]} : vector<2x8x4xf32> to vector<2x1x1xf32>
    %238 = vector.shape_cast %237 : vector<2x1x1xf32> to vector<2x1xf32>
    %239 = vector.shape_cast %231 : vector<2x32xf32> to vector<2x1x32xf32>
    %240 = vector.broadcast %239 : vector<2x1x32xf32> to vector<2x8x32xf32>
    %241 = arith.mulf %240, %234 : vector<2x8x32xf32>
    %cst_62 = arith.constant dense<0.000000e+00> : vector<2x8xf32>
    %242 = vector.multi_reduction <add>, %241, %cst_62 [2] : vector<2x8x32xf32> to vector<2x8xf32>
    %cst_63 = arith.constant dense<0xFF800000> : vector<2xf32>
    %243 = vector.multi_reduction <maximumf>, %242, %cst_63 [1] : vector<2x8xf32> to vector<2xf32>
    %244 = vector.shape_cast %243 : vector<2xf32> to vector<2x1xf32>
    %245 = vector.broadcast %244 : vector<2x1xf32> to vector<2x8xf32>
    %246 = arith.subf %242, %245 : vector<2x8xf32>
    %247 = math.exp %246 : vector<2x8xf32>
    %cst_64 = arith.constant dense<0.000000e+00> : vector<2xf32>
    %248 = vector.multi_reduction <add>, %247, %cst_64 [1] : vector<2x8xf32> to vector<2xf32>
    %249 = vector.shape_cast %248 : vector<2xf32> to vector<2x1xf32>
    %250 = tpu.reciprocal %249 {approx = true} : vector<2x1xf32> -> vector<2x1xf32>
    %251 = vector.broadcast %250 : vector<2x1xf32> to vector<2x8xf32>
    %252 = arith.mulf %247, %251 : vector<2x8xf32>
    %253 = vector.shape_cast %252 : vector<2x8xf32> to vector<2x8x1xf32>
    %254 = vector.broadcast %253 : vector<2x8x1xf32> to vector<2x8x32xf32>
    %255 = arith.mulf %254, %234 : vector<2x8x32xf32>
    %cst_65 = arith.constant dense<0.000000e+00> : vector<2x32xf32>
    %256 = vector.multi_reduction <add>, %255, %cst_65 [1] : vector<2x8x32xf32> to vector<2x32xf32>
    %257 = tpu.concatenate %256, %231 in 1 : vector<2x32xf32>, vector<2x32xf32> -> vector<2x64xf32>
    %258 = vector.broadcast %238 : vector<2x1xf32> to vector<2x128xf32>
    %259 = vector.broadcast %3 : vector<1x128xf32> to vector<2x128xf32>
    %260 = arith.mulf %258, %259 : vector<2x128xf32>
    %261 = arith.addf %236, %260 : vector<2x128xf32>
    %cst_66 = arith.constant dense<0.000000e+00> : vector<2x128xf32>
    %262 = tpu.matmul %257, %4, %cst_66 {dimension_numbers = #tpu.dot_dimension_numbers<[1], [0], [0], [1], [0, 0, 1, 1], [], []>} : vector<2x64xf32>, vector<64x128xf32>, vector<2x128xf32> -> vector<2x128xf32>
    %263 = arith.addf %261, %262 : vector<2x128xf32>
    %264 = vector.broadcast %15 : vector<1x128xf32> to vector<2x128xf32>
    %265 = arith.mulf %263, %264 : vector<2x128xf32>
    %266 = arith.negf %265 : vector<2x128xf32>
    %267 = math.exp %266 : vector<2x128xf32>
    %cst_67 = arith.constant 1.000000e+00 : f32
    %268 = vector.broadcast %cst_67 : f32 to vector<2x128xf32>
    %269 = arith.addf %268, %267 : vector<2x128xf32>
    %270 = arith.divf %268, %269 : vector<2x128xf32>
    %271 = vector.broadcast %15 : vector<1x128xf32> to vector<2x128xf32>
    %272 = arith.mulf %270, %271 : vector<2x128xf32>
    %273 = vector.broadcast %18 : vector<1x128xf32> to vector<2x128xf32>
    %274 = arith.addf %272, %273 : vector<2x128xf32>
    %275 = vector.extract_strided_slice %274 {offsets = [0, 0], sizes = [2, 32], strides = [1, 1]} : vector<2x128xf32> to vector<2x32xf32>
    %276 = vector.extract_strided_slice %274 {offsets = [0, 32], sizes = [2, 32], strides = [1, 1]} : vector<2x128xf32> to vector<2x32xf32>
    %277 = vector.extract_strided_slice %274 {offsets = [0, 64], sizes = [2, 32], strides = [1, 1]} : vector<2x128xf32> to vector<2x32xf32>
    %278 = vector.extract_strided_slice %274 {offsets = [0, 96], sizes = [2, 32], strides = [1, 1]} : vector<2x128xf32> to vector<2x32xf32>
    %279 = arith.mulf %276, %229 : vector<2x32xf32>
    %280 = arith.mulf %275, %278 : vector<2x32xf32>
    %281 = arith.addf %279, %280 : vector<2x32xf32>
    %282 = math.tanh %281 : vector<2x32xf32>
    %283 = arith.mulf %277, %282 : vector<2x32xf32>
    %284 = vector.broadcast %6 : vector<1x32xf32> to vector<2x32xf32>
    %285 = arith.mulf %283, %284 : vector<2x32xf32>
    %286 = vector.broadcast %7 : vector<1x32xf32> to vector<2x32xf32>
    %287 = arith.mulf %256, %286 : vector<2x32xf32>
    %288 = arith.addf %285, %287 : vector<2x32xf32>
    %cst_68 = arith.constant dense<0.000000e+00> : vector<2xf32>
    %289 = vector.multi_reduction <add>, %288, %cst_68 [1] : vector<2x32xf32> to vector<2xf32>
    %290 = vector.shape_cast %289 : vector<2xf32> to vector<2x1xf32>
    %291 = vector.broadcast %8 : vector<1x1xf32> to vector<2x1xf32>
    %292 = arith.addf %290, %291 : vector<2x1xf32>
    %293 = vector.shape_cast %283 : vector<2x32xf32> to vector<2x1x32xf32>
    %294 = vector.broadcast %293 : vector<2x1x32xf32> to vector<2x8x32xf32>
    %295 = arith.mulf %294, %234 : vector<2x8x32xf32>
    %cst_69 = arith.constant dense<0.000000e+00> : vector<2x8xf32>
    %296 = vector.multi_reduction <add>, %295, %cst_69 [2] : vector<2x8x32xf32> to vector<2x8xf32>
    %cst_70 = arith.constant dense<0xFF800000> : vector<2xf32>
    %297 = vector.multi_reduction <maximumf>, %296, %cst_70 [1] : vector<2x8xf32> to vector<2xf32>
    %298 = vector.shape_cast %297 : vector<2xf32> to vector<2x1xf32>
    %299 = vector.broadcast %298 : vector<2x1xf32> to vector<2x8xf32>
    %300 = arith.subf %296, %299 : vector<2x8xf32>
    %301 = math.exp %300 : vector<2x8xf32>
    %cst_71 = arith.constant dense<0.000000e+00> : vector<2xf32>
    %302 = vector.multi_reduction <add>, %301, %cst_71 [1] : vector<2x8xf32> to vector<2xf32>
    %303 = vector.shape_cast %302 : vector<2xf32> to vector<2x1xf32>
    %304 = tpu.reciprocal %303 {approx = true} : vector<2x1xf32> -> vector<2x1xf32>
    %305 = vector.broadcast %304 : vector<2x1xf32> to vector<2x8xf32>
    %306 = arith.mulf %301, %305 : vector<2x8xf32>
    %307 = vector.shape_cast %306 : vector<2x8xf32> to vector<2x8x1xf32>
    %308 = vector.broadcast %307 : vector<2x8x1xf32> to vector<2x8x32xf32>
    %309 = arith.mulf %308, %234 : vector<2x8x32xf32>
    %cst_72 = arith.constant dense<0.000000e+00> : vector<2x32xf32>
    %310 = vector.multi_reduction <add>, %309, %cst_72 [1] : vector<2x8x32xf32> to vector<2x32xf32>
    %311 = tpu.concatenate %310, %283 in 1 : vector<2x32xf32>, vector<2x32xf32> -> vector<2x64xf32>
    %312 = vector.broadcast %292 : vector<2x1xf32> to vector<2x128xf32>
    %313 = vector.broadcast %3 : vector<1x128xf32> to vector<2x128xf32>
    %314 = arith.mulf %312, %313 : vector<2x128xf32>
    %315 = arith.addf %236, %314 : vector<2x128xf32>
    %cst_73 = arith.constant dense<0.000000e+00> : vector<2x128xf32>
    %316 = tpu.matmul %311, %4, %cst_73 {dimension_numbers = #tpu.dot_dimension_numbers<[1], [0], [0], [1], [0, 0, 1, 1], [], []>} : vector<2x64xf32>, vector<64x128xf32>, vector<2x128xf32> -> vector<2x128xf32>
    %317 = arith.addf %315, %316 : vector<2x128xf32>
    %318 = vector.broadcast %15 : vector<1x128xf32> to vector<2x128xf32>
    %319 = arith.mulf %317, %318 : vector<2x128xf32>
    %320 = arith.negf %319 : vector<2x128xf32>
    %321 = math.exp %320 : vector<2x128xf32>
    %cst_74 = arith.constant 1.000000e+00 : f32
    %322 = vector.broadcast %cst_74 : f32 to vector<2x128xf32>
    %323 = arith.addf %322, %321 : vector<2x128xf32>
    %324 = arith.divf %322, %323 : vector<2x128xf32>
    %325 = vector.broadcast %15 : vector<1x128xf32> to vector<2x128xf32>
    %326 = arith.mulf %324, %325 : vector<2x128xf32>
    %327 = vector.broadcast %18 : vector<1x128xf32> to vector<2x128xf32>
    %328 = arith.addf %326, %327 : vector<2x128xf32>
    %329 = vector.extract_strided_slice %328 {offsets = [0, 0], sizes = [2, 32], strides = [1, 1]} : vector<2x128xf32> to vector<2x32xf32>
    %330 = vector.extract_strided_slice %328 {offsets = [0, 32], sizes = [2, 32], strides = [1, 1]} : vector<2x128xf32> to vector<2x32xf32>
    %331 = vector.extract_strided_slice %328 {offsets = [0, 64], sizes = [2, 32], strides = [1, 1]} : vector<2x128xf32> to vector<2x32xf32>
    %332 = vector.extract_strided_slice %328 {offsets = [0, 96], sizes = [2, 32], strides = [1, 1]} : vector<2x128xf32> to vector<2x32xf32>
    %333 = arith.mulf %330, %281 : vector<2x32xf32>
    %334 = arith.mulf %329, %332 : vector<2x32xf32>
    %335 = arith.addf %333, %334 : vector<2x32xf32>
    %336 = math.tanh %335 : vector<2x32xf32>
    %337 = arith.mulf %331, %336 : vector<2x32xf32>
    %338 = vector.broadcast %6 : vector<1x32xf32> to vector<2x32xf32>
    %339 = arith.mulf %337, %338 : vector<2x32xf32>
    %340 = vector.broadcast %7 : vector<1x32xf32> to vector<2x32xf32>
    %341 = arith.mulf %310, %340 : vector<2x32xf32>
    %342 = arith.addf %339, %341 : vector<2x32xf32>
    %cst_75 = arith.constant dense<0.000000e+00> : vector<2xf32>
    %343 = vector.multi_reduction <add>, %342, %cst_75 [1] : vector<2x32xf32> to vector<2xf32>
    %344 = vector.shape_cast %343 : vector<2xf32> to vector<2x1xf32>
    %345 = vector.broadcast %8 : vector<1x1xf32> to vector<2x1xf32>
    %346 = arith.addf %344, %345 : vector<2x1xf32>
    %347 = vector.shape_cast %337 : vector<2x32xf32> to vector<2x1x32xf32>
    %348 = vector.broadcast %347 : vector<2x1x32xf32> to vector<2x8x32xf32>
    %349 = arith.mulf %348, %234 : vector<2x8x32xf32>
    %cst_76 = arith.constant dense<0.000000e+00> : vector<2x8xf32>
    %350 = vector.multi_reduction <add>, %349, %cst_76 [2] : vector<2x8x32xf32> to vector<2x8xf32>
    %cst_77 = arith.constant dense<0xFF800000> : vector<2xf32>
    %351 = vector.multi_reduction <maximumf>, %350, %cst_77 [1] : vector<2x8xf32> to vector<2xf32>
    %352 = vector.shape_cast %351 : vector<2xf32> to vector<2x1xf32>
    %353 = vector.broadcast %352 : vector<2x1xf32> to vector<2x8xf32>
    %354 = arith.subf %350, %353 : vector<2x8xf32>
    %355 = math.exp %354 : vector<2x8xf32>
    %cst_78 = arith.constant dense<0.000000e+00> : vector<2xf32>
    %356 = vector.multi_reduction <add>, %355, %cst_78 [1] : vector<2x8xf32> to vector<2xf32>
    %357 = vector.shape_cast %356 : vector<2xf32> to vector<2x1xf32>
    %358 = tpu.reciprocal %357 {approx = true} : vector<2x1xf32> -> vector<2x1xf32>
    %359 = vector.broadcast %358 : vector<2x1xf32> to vector<2x8xf32>
    %360 = arith.mulf %355, %359 : vector<2x8xf32>
    %361 = vector.shape_cast %360 : vector<2x8xf32> to vector<2x8x1xf32>
    %362 = vector.broadcast %361 : vector<2x8x1xf32> to vector<2x8x32xf32>
    %363 = arith.mulf %362, %234 : vector<2x8x32xf32>
    %cst_79 = arith.constant dense<0.000000e+00> : vector<2x32xf32>
    %364 = vector.multi_reduction <add>, %363, %cst_79 [1] : vector<2x8x32xf32> to vector<2x32xf32>
    %365 = tpu.concatenate %364, %337 in 1 : vector<2x32xf32>, vector<2x32xf32> -> vector<2x64xf32>
    %366 = vector.broadcast %346 : vector<2x1xf32> to vector<2x128xf32>
    %367 = vector.broadcast %3 : vector<1x128xf32> to vector<2x128xf32>
    %368 = arith.mulf %366, %367 : vector<2x128xf32>
    %369 = arith.addf %236, %368 : vector<2x128xf32>
    %cst_80 = arith.constant dense<0.000000e+00> : vector<2x128xf32>
    %370 = tpu.matmul %365, %4, %cst_80 {dimension_numbers = #tpu.dot_dimension_numbers<[1], [0], [0], [1], [0, 0, 1, 1], [], []>} : vector<2x64xf32>, vector<64x128xf32>, vector<2x128xf32> -> vector<2x128xf32>
    %371 = arith.addf %369, %370 : vector<2x128xf32>
    %372 = vector.broadcast %15 : vector<1x128xf32> to vector<2x128xf32>
    %373 = arith.mulf %371, %372 : vector<2x128xf32>
    %374 = arith.negf %373 : vector<2x128xf32>
    %375 = math.exp %374 : vector<2x128xf32>
    %cst_81 = arith.constant 1.000000e+00 : f32
    %376 = vector.broadcast %cst_81 : f32 to vector<2x128xf32>
    %377 = arith.addf %376, %375 : vector<2x128xf32>
    %378 = arith.divf %376, %377 : vector<2x128xf32>
    %379 = vector.broadcast %15 : vector<1x128xf32> to vector<2x128xf32>
    %380 = arith.mulf %378, %379 : vector<2x128xf32>
    %381 = vector.broadcast %18 : vector<1x128xf32> to vector<2x128xf32>
    %382 = arith.addf %380, %381 : vector<2x128xf32>
    %383 = vector.extract_strided_slice %382 {offsets = [0, 0], sizes = [2, 32], strides = [1, 1]} : vector<2x128xf32> to vector<2x32xf32>
    %384 = vector.extract_strided_slice %382 {offsets = [0, 32], sizes = [2, 32], strides = [1, 1]} : vector<2x128xf32> to vector<2x32xf32>
    %385 = vector.extract_strided_slice %382 {offsets = [0, 64], sizes = [2, 32], strides = [1, 1]} : vector<2x128xf32> to vector<2x32xf32>
    %386 = vector.extract_strided_slice %382 {offsets = [0, 96], sizes = [2, 32], strides = [1, 1]} : vector<2x128xf32> to vector<2x32xf32>
    %387 = arith.mulf %384, %335 : vector<2x32xf32>
    %388 = arith.mulf %383, %386 : vector<2x32xf32>
    %389 = arith.addf %387, %388 : vector<2x32xf32>
    %390 = math.tanh %389 : vector<2x32xf32>
    %391 = arith.mulf %385, %390 : vector<2x32xf32>
    %392 = vector.broadcast %6 : vector<1x32xf32> to vector<2x32xf32>
    %393 = arith.mulf %391, %392 : vector<2x32xf32>
    %394 = vector.broadcast %7 : vector<1x32xf32> to vector<2x32xf32>
    %395 = arith.mulf %364, %394 : vector<2x32xf32>
    %396 = arith.addf %393, %395 : vector<2x32xf32>
    %cst_82 = arith.constant dense<0.000000e+00> : vector<2xf32>
    %397 = vector.multi_reduction <add>, %396, %cst_82 [1] : vector<2x32xf32> to vector<2xf32>
    %398 = vector.shape_cast %397 : vector<2xf32> to vector<2x1xf32>
    %399 = vector.broadcast %8 : vector<1x1xf32> to vector<2x1xf32>
    %400 = arith.addf %398, %399 : vector<2x1xf32>
    %401 = vector.shape_cast %391 : vector<2x32xf32> to vector<2x1x32xf32>
    %402 = vector.broadcast %401 : vector<2x1x32xf32> to vector<2x8x32xf32>
    %403 = arith.mulf %402, %234 : vector<2x8x32xf32>
    %cst_83 = arith.constant dense<0.000000e+00> : vector<2x8xf32>
    %404 = vector.multi_reduction <add>, %403, %cst_83 [2] : vector<2x8x32xf32> to vector<2x8xf32>
    %cst_84 = arith.constant dense<0xFF800000> : vector<2xf32>
    %405 = vector.multi_reduction <maximumf>, %404, %cst_84 [1] : vector<2x8xf32> to vector<2xf32>
    %406 = vector.shape_cast %405 : vector<2xf32> to vector<2x1xf32>
    %407 = vector.broadcast %406 : vector<2x1xf32> to vector<2x8xf32>
    %408 = arith.subf %404, %407 : vector<2x8xf32>
    %409 = math.exp %408 : vector<2x8xf32>
    %cst_85 = arith.constant dense<0.000000e+00> : vector<2xf32>
    %410 = vector.multi_reduction <add>, %409, %cst_85 [1] : vector<2x8xf32> to vector<2xf32>
    %411 = vector.shape_cast %410 : vector<2xf32> to vector<2x1xf32>
    %412 = tpu.reciprocal %411 {approx = true} : vector<2x1xf32> -> vector<2x1xf32>
    %413 = vector.broadcast %412 : vector<2x1xf32> to vector<2x8xf32>
    %414 = arith.mulf %409, %413 : vector<2x8xf32>
    %415 = vector.shape_cast %414 : vector<2x8xf32> to vector<2x8x1xf32>
    %416 = vector.broadcast %415 : vector<2x8x1xf32> to vector<2x8x32xf32>
    %417 = arith.mulf %416, %234 : vector<2x8x32xf32>
    %cst_86 = arith.constant dense<0.000000e+00> : vector<2x32xf32>
    %418 = vector.multi_reduction <add>, %417, %cst_86 [1] : vector<2x8x32xf32> to vector<2x32xf32>
    %419 = tpu.concatenate %418, %391 in 1 : vector<2x32xf32>, vector<2x32xf32> -> vector<2x64xf32>
    %420 = vector.broadcast %400 : vector<2x1xf32> to vector<2x128xf32>
    %421 = vector.broadcast %3 : vector<1x128xf32> to vector<2x128xf32>
    %422 = arith.mulf %420, %421 : vector<2x128xf32>
    %423 = arith.addf %236, %422 : vector<2x128xf32>
    %cst_87 = arith.constant dense<0.000000e+00> : vector<2x128xf32>
    %424 = tpu.matmul %419, %4, %cst_87 {dimension_numbers = #tpu.dot_dimension_numbers<[1], [0], [0], [1], [0, 0, 1, 1], [], []>} : vector<2x64xf32>, vector<64x128xf32>, vector<2x128xf32> -> vector<2x128xf32>
    %425 = arith.addf %423, %424 : vector<2x128xf32>
    %426 = vector.broadcast %15 : vector<1x128xf32> to vector<2x128xf32>
    %427 = arith.mulf %425, %426 : vector<2x128xf32>
    %428 = arith.negf %427 : vector<2x128xf32>
    %429 = math.exp %428 : vector<2x128xf32>
    %cst_88 = arith.constant 1.000000e+00 : f32
    %430 = vector.broadcast %cst_88 : f32 to vector<2x128xf32>
    %431 = arith.addf %430, %429 : vector<2x128xf32>
    %432 = arith.divf %430, %431 : vector<2x128xf32>
    %433 = vector.broadcast %15 : vector<1x128xf32> to vector<2x128xf32>
    %434 = arith.mulf %432, %433 : vector<2x128xf32>
    %435 = vector.broadcast %18 : vector<1x128xf32> to vector<2x128xf32>
    %436 = arith.addf %434, %435 : vector<2x128xf32>
    %437 = vector.extract_strided_slice %436 {offsets = [0, 0], sizes = [2, 32], strides = [1, 1]} : vector<2x128xf32> to vector<2x32xf32>
    %438 = vector.extract_strided_slice %436 {offsets = [0, 32], sizes = [2, 32], strides = [1, 1]} : vector<2x128xf32> to vector<2x32xf32>
    %439 = vector.extract_strided_slice %436 {offsets = [0, 64], sizes = [2, 32], strides = [1, 1]} : vector<2x128xf32> to vector<2x32xf32>
    %440 = vector.extract_strided_slice %436 {offsets = [0, 96], sizes = [2, 32], strides = [1, 1]} : vector<2x128xf32> to vector<2x32xf32>
    %441 = arith.mulf %438, %389 : vector<2x32xf32>
    %442 = arith.mulf %437, %440 : vector<2x32xf32>
    %443 = arith.addf %441, %442 : vector<2x32xf32>
    %444 = math.tanh %443 : vector<2x32xf32>
    %445 = arith.mulf %439, %444 : vector<2x32xf32>
    %446 = vector.broadcast %6 : vector<1x32xf32> to vector<2x32xf32>
    %447 = arith.mulf %445, %446 : vector<2x32xf32>
    %448 = vector.broadcast %7 : vector<1x32xf32> to vector<2x32xf32>
    %449 = arith.mulf %418, %448 : vector<2x32xf32>
    %450 = arith.addf %447, %449 : vector<2x32xf32>
    %cst_89 = arith.constant dense<0.000000e+00> : vector<2xf32>
    %451 = vector.multi_reduction <add>, %450, %cst_89 [1] : vector<2x32xf32> to vector<2xf32>
    %452 = vector.shape_cast %451 : vector<2xf32> to vector<2x1xf32>
    %453 = vector.broadcast %8 : vector<1x1xf32> to vector<2x1xf32>
    %454 = arith.addf %452, %453 : vector<2x1xf32>
    %455 = vector.shape_cast %445 : vector<2x32xf32> to vector<2x1x32xf32>
    %456 = vector.broadcast %455 : vector<2x1x32xf32> to vector<2x8x32xf32>
    %457 = arith.mulf %456, %234 : vector<2x8x32xf32>
    %cst_90 = arith.constant dense<0.000000e+00> : vector<2x8xf32>
    %458 = vector.multi_reduction <add>, %457, %cst_90 [2] : vector<2x8x32xf32> to vector<2x8xf32>
    %cst_91 = arith.constant dense<0xFF800000> : vector<2xf32>
    %459 = vector.multi_reduction <maximumf>, %458, %cst_91 [1] : vector<2x8xf32> to vector<2xf32>
    %460 = vector.shape_cast %459 : vector<2xf32> to vector<2x1xf32>
    %461 = vector.broadcast %460 : vector<2x1xf32> to vector<2x8xf32>
    %462 = arith.subf %458, %461 : vector<2x8xf32>
    %463 = math.exp %462 : vector<2x8xf32>
    %cst_92 = arith.constant dense<0.000000e+00> : vector<2xf32>
    %464 = vector.multi_reduction <add>, %463, %cst_92 [1] : vector<2x8xf32> to vector<2xf32>
    %465 = vector.shape_cast %464 : vector<2xf32> to vector<2x1xf32>
    %466 = tpu.reciprocal %465 {approx = true} : vector<2x1xf32> -> vector<2x1xf32>
    %467 = vector.broadcast %466 : vector<2x1xf32> to vector<2x8xf32>
    %468 = arith.mulf %463, %467 : vector<2x8xf32>
    %469 = vector.shape_cast %468 : vector<2x8xf32> to vector<2x8x1xf32>
    %470 = vector.broadcast %469 : vector<2x8x1xf32> to vector<2x8x32xf32>
    %471 = arith.mulf %470, %234 : vector<2x8x32xf32>
    %cst_93 = arith.constant dense<0.000000e+00> : vector<2x32xf32>
    %472 = vector.multi_reduction <add>, %471, %cst_93 [1] : vector<2x8x32xf32> to vector<2x32xf32>
    %473 = tpu.concatenate %472, %445 in 1 : vector<2x32xf32>, vector<2x32xf32> -> vector<2x64xf32>
    %474 = vector.broadcast %454 : vector<2x1xf32> to vector<2x128xf32>
    %475 = vector.broadcast %3 : vector<1x128xf32> to vector<2x128xf32>
    %476 = arith.mulf %474, %475 : vector<2x128xf32>
    %477 = arith.addf %236, %476 : vector<2x128xf32>
    %cst_94 = arith.constant dense<0.000000e+00> : vector<2x128xf32>
    %478 = tpu.matmul %473, %4, %cst_94 {dimension_numbers = #tpu.dot_dimension_numbers<[1], [0], [0], [1], [0, 0, 1, 1], [], []>} : vector<2x64xf32>, vector<64x128xf32>, vector<2x128xf32> -> vector<2x128xf32>
    %479 = arith.addf %477, %478 : vector<2x128xf32>
    %480 = vector.broadcast %15 : vector<1x128xf32> to vector<2x128xf32>
    %481 = arith.mulf %479, %480 : vector<2x128xf32>
    %482 = arith.negf %481 : vector<2x128xf32>
    %483 = math.exp %482 : vector<2x128xf32>
    %cst_95 = arith.constant 1.000000e+00 : f32
    %484 = vector.broadcast %cst_95 : f32 to vector<2x128xf32>
    %485 = arith.addf %484, %483 : vector<2x128xf32>
    %486 = arith.divf %484, %485 : vector<2x128xf32>
    %487 = vector.broadcast %15 : vector<1x128xf32> to vector<2x128xf32>
    %488 = arith.mulf %486, %487 : vector<2x128xf32>
    %489 = vector.broadcast %18 : vector<1x128xf32> to vector<2x128xf32>
    %490 = arith.addf %488, %489 : vector<2x128xf32>
    %491 = vector.extract_strided_slice %490 {offsets = [0, 0], sizes = [2, 32], strides = [1, 1]} : vector<2x128xf32> to vector<2x32xf32>
    %492 = vector.extract_strided_slice %490 {offsets = [0, 32], sizes = [2, 32], strides = [1, 1]} : vector<2x128xf32> to vector<2x32xf32>
    %493 = vector.extract_strided_slice %490 {offsets = [0, 64], sizes = [2, 32], strides = [1, 1]} : vector<2x128xf32> to vector<2x32xf32>
    %494 = vector.extract_strided_slice %490 {offsets = [0, 96], sizes = [2, 32], strides = [1, 1]} : vector<2x128xf32> to vector<2x32xf32>
    %495 = arith.mulf %492, %443 : vector<2x32xf32>
    %496 = arith.mulf %491, %494 : vector<2x32xf32>
    %497 = arith.addf %495, %496 : vector<2x32xf32>
    %498 = math.tanh %497 : vector<2x32xf32>
    %499 = arith.mulf %493, %498 : vector<2x32xf32>
    %500 = vector.broadcast %6 : vector<1x32xf32> to vector<2x32xf32>
    %501 = arith.mulf %499, %500 : vector<2x32xf32>
    %502 = vector.broadcast %7 : vector<1x32xf32> to vector<2x32xf32>
    %503 = arith.mulf %472, %502 : vector<2x32xf32>
    %504 = arith.addf %501, %503 : vector<2x32xf32>
    %cst_96 = arith.constant dense<0.000000e+00> : vector<2xf32>
    %505 = vector.multi_reduction <add>, %504, %cst_96 [1] : vector<2x32xf32> to vector<2xf32>
    %506 = vector.shape_cast %505 : vector<2xf32> to vector<2x1xf32>
    %507 = vector.broadcast %8 : vector<1x1xf32> to vector<2x1xf32>
    %508 = arith.addf %506, %507 : vector<2x1xf32>
    %509 = vector.shape_cast %499 : vector<2x32xf32> to vector<2x1x32xf32>
    %510 = vector.broadcast %509 : vector<2x1x32xf32> to vector<2x8x32xf32>
    %511 = arith.mulf %510, %234 : vector<2x8x32xf32>
    %cst_97 = arith.constant dense<0.000000e+00> : vector<2x8xf32>
    %512 = vector.multi_reduction <add>, %511, %cst_97 [2] : vector<2x8x32xf32> to vector<2x8xf32>
    %cst_98 = arith.constant dense<0xFF800000> : vector<2xf32>
    %513 = vector.multi_reduction <maximumf>, %512, %cst_98 [1] : vector<2x8xf32> to vector<2xf32>
    %514 = vector.shape_cast %513 : vector<2xf32> to vector<2x1xf32>
    %515 = vector.broadcast %514 : vector<2x1xf32> to vector<2x8xf32>
    %516 = arith.subf %512, %515 : vector<2x8xf32>
    %517 = math.exp %516 : vector<2x8xf32>
    %cst_99 = arith.constant dense<0.000000e+00> : vector<2xf32>
    %518 = vector.multi_reduction <add>, %517, %cst_99 [1] : vector<2x8xf32> to vector<2xf32>
    %519 = vector.shape_cast %518 : vector<2xf32> to vector<2x1xf32>
    %520 = tpu.reciprocal %519 {approx = true} : vector<2x1xf32> -> vector<2x1xf32>
    %521 = vector.broadcast %520 : vector<2x1xf32> to vector<2x8xf32>
    %522 = arith.mulf %517, %521 : vector<2x8xf32>
    %523 = vector.shape_cast %522 : vector<2x8xf32> to vector<2x8x1xf32>
    %524 = vector.broadcast %523 : vector<2x8x1xf32> to vector<2x8x32xf32>
    %525 = arith.mulf %524, %234 : vector<2x8x32xf32>
    %cst_100 = arith.constant dense<0.000000e+00> : vector<2x32xf32>
    %526 = vector.multi_reduction <add>, %525, %cst_100 [1] : vector<2x8x32xf32> to vector<2x32xf32>
    %527 = tpu.concatenate %526, %499 in 1 : vector<2x32xf32>, vector<2x32xf32> -> vector<2x64xf32>
    %528 = vector.broadcast %508 : vector<2x1xf32> to vector<2x128xf32>
    %529 = vector.broadcast %3 : vector<1x128xf32> to vector<2x128xf32>
    %530 = arith.mulf %528, %529 : vector<2x128xf32>
    %531 = arith.addf %236, %530 : vector<2x128xf32>
    %cst_101 = arith.constant dense<0.000000e+00> : vector<2x128xf32>
    %532 = tpu.matmul %527, %4, %cst_101 {dimension_numbers = #tpu.dot_dimension_numbers<[1], [0], [0], [1], [0, 0, 1, 1], [], []>} : vector<2x64xf32>, vector<64x128xf32>, vector<2x128xf32> -> vector<2x128xf32>
    %533 = arith.addf %531, %532 : vector<2x128xf32>
    %534 = vector.broadcast %15 : vector<1x128xf32> to vector<2x128xf32>
    %535 = arith.mulf %533, %534 : vector<2x128xf32>
    %536 = arith.negf %535 : vector<2x128xf32>
    %537 = math.exp %536 : vector<2x128xf32>
    %cst_102 = arith.constant 1.000000e+00 : f32
    %538 = vector.broadcast %cst_102 : f32 to vector<2x128xf32>
    %539 = arith.addf %538, %537 : vector<2x128xf32>
    %540 = arith.divf %538, %539 : vector<2x128xf32>
    %541 = vector.broadcast %15 : vector<1x128xf32> to vector<2x128xf32>
    %542 = arith.mulf %540, %541 : vector<2x128xf32>
    %543 = vector.broadcast %18 : vector<1x128xf32> to vector<2x128xf32>
    %544 = arith.addf %542, %543 : vector<2x128xf32>
    %545 = vector.extract_strided_slice %544 {offsets = [0, 0], sizes = [2, 32], strides = [1, 1]} : vector<2x128xf32> to vector<2x32xf32>
    %546 = vector.extract_strided_slice %544 {offsets = [0, 32], sizes = [2, 32], strides = [1, 1]} : vector<2x128xf32> to vector<2x32xf32>
    %547 = vector.extract_strided_slice %544 {offsets = [0, 64], sizes = [2, 32], strides = [1, 1]} : vector<2x128xf32> to vector<2x32xf32>
    %548 = vector.extract_strided_slice %544 {offsets = [0, 96], sizes = [2, 32], strides = [1, 1]} : vector<2x128xf32> to vector<2x32xf32>
    %549 = arith.mulf %546, %497 : vector<2x32xf32>
    %550 = arith.mulf %545, %548 : vector<2x32xf32>
    %551 = arith.addf %549, %550 : vector<2x32xf32>
    %552 = math.tanh %551 : vector<2x32xf32>
    %553 = arith.mulf %547, %552 : vector<2x32xf32>
    %554 = vector.broadcast %6 : vector<1x32xf32> to vector<2x32xf32>
    %555 = arith.mulf %553, %554 : vector<2x32xf32>
    %556 = vector.broadcast %7 : vector<1x32xf32> to vector<2x32xf32>
    %557 = arith.mulf %526, %556 : vector<2x32xf32>
    %558 = arith.addf %555, %557 : vector<2x32xf32>
    %cst_103 = arith.constant dense<0.000000e+00> : vector<2xf32>
    %559 = vector.multi_reduction <add>, %558, %cst_103 [1] : vector<2x32xf32> to vector<2xf32>
    %560 = vector.shape_cast %559 : vector<2xf32> to vector<2x1xf32>
    %561 = vector.broadcast %8 : vector<1x1xf32> to vector<2x1xf32>
    %562 = arith.addf %560, %561 : vector<2x1xf32>
    %563 = tpu.concatenate %292, %346, %400, %454, %508, %562 in 1 : vector<2x1xf32>, vector<2x1xf32>, vector<2x1xf32>, vector<2x1xf32>, vector<2x1xf32>, vector<2x1xf32> -> vector<2x6xf32>
    %c0_104 = arith.constant 0 : index
    %c0_105 = arith.constant 0 : index
    %564 = vector.load %arg11[%c0_104, %c0_105] : memref<2x6xf32, #tpu.memory_space<vmem>>, vector<2x6xf32>
    tpu.vector_store %arg11[%c0_104, %c0_105], %563 {strides = array<i32>} : memref<2x6xf32, #tpu.memory_space<vmem>>, vector<2x6xf32>,
    return
  }
  func.func @transform_0(%arg0: i32) -> (i32, i32, i32) {
    %c0_i32 = arith.constant 0 : i32
    %c0_i32_0 = arith.constant 0 : i32
    %c0_i32_1 = arith.constant 0 : i32
    return %arg0, %c0_i32, %c0_i32_0 : i32, i32, i32
  }
  func.func @transform_1(%arg0: i32) -> (i32, i32) {
    %c0_i32 = arith.constant 0 : i32
    %c0_i32_0 = arith.constant 0 : i32
    %c0_i32_1 = arith.constant 0 : i32
    return %c0_i32, %c0_i32_0 : i32, i32
  }
  func.func @transform_2(%arg0: i32) -> (i32, i32) {
    %c0_i32 = arith.constant 0 : i32
    %c0_i32_0 = arith.constant 0 : i32
    %c0_i32_1 = arith.constant 0 : i32
    return %c0_i32, %c0_i32_0 : i32, i32
  }
  func.func @transform_3(%arg0: i32) -> (i32, i32) {
    %c0_i32 = arith.constant 0 : i32
    %c0_i32_0 = arith.constant 0 : i32
    %c0_i32_1 = arith.constant 0 : i32
    return %c0_i32, %c0_i32_0 : i32, i32
  }
  func.func @transform_4(%arg0: i32) -> (i32, i32) {
    %c0_i32 = arith.constant 0 : i32
    %c0_i32_0 = arith.constant 0 : i32
    %c0_i32_1 = arith.constant 0 : i32
    return %c0_i32, %c0_i32_0 : i32, i32
  }
  func.func @transform_5(%arg0: i32) -> (i32, i32) {
    %c0_i32 = arith.constant 0 : i32
    %c0_i32_0 = arith.constant 0 : i32
    %c0_i32_1 = arith.constant 0 : i32
    return %c0_i32, %c0_i32_0 : i32, i32
  }
  func.func @transform_6(%arg0: i32) -> (i32, i32) {
    %c0_i32 = arith.constant 0 : i32
    %c0_i32_0 = arith.constant 0 : i32
    %c0_i32_1 = arith.constant 0 : i32
    return %c0_i32, %c0_i32_0 : i32, i32
  }
  func.func @transform_7(%arg0: i32) -> (i32, i32) {
    %c0_i32 = arith.constant 0 : i32
    %c0_i32_0 = arith.constant 0 : i32
    %c0_i32_1 = arith.constant 0 : i32
    return %c0_i32, %c0_i32_0 : i32, i32
  }
  func.func @transform_8(%arg0: i32) -> (i32, i32) {
    %c0_i32 = arith.constant 0 : i32
    %c0_i32_0 = arith.constant 0 : i32
    %c0_i32_1 = arith.constant 0 : i32
    return %c0_i32, %c0_i32_0 : i32, i32
  }
  func.func @transform_9(%arg0: i32) -> (i32, i32) {
    %c0_i32 = arith.constant 0 : i32
    %c0_i32_0 = arith.constant 0 : i32
    %c0_i32_1 = arith.constant 0 : i32
    return %c0_i32, %c0_i32_0 : i32, i32
  }
  func.func @transform_10(%arg0: i32) -> (i32, i32) {
    %c0_i32 = arith.constant 0 : i32
    %c0_i32_0 = arith.constant 0 : i32
    return %arg0, %c0_i32 : i32, i32
  }
}

</mosaic_0001>

<llo_original>
// kernel: seq2seq_forward.1
$region0: #{seq2seq_forward.1}
  #allocation0 [shape = 'u32[]', space=smem, size = 0x4, offset = 0x4, fixed_abs, tag = 'smem constant byte address 0x4 - core index']
  #allocation1 [shape = 'u32[72,128]{1,0:T(1,128)}', space=vmem, size = 0x9000, scoped, tag = 'internal scratch']
  #allocation2 [shape = 'f32[2,8,32]{2,1,0:T(8,128)}', space=vmem, size = 0x2000, scoped, tag = 'scratch operand']
  #allocation3 [shape = 'f32[1,1]{1,0:T(1,128)S(1)}', space=vmem, size = 0x200, scoped, tag = 'scoped memory for seq2seq_forward.1']
  %s0 = inlined_call_operand.vmem [shape: f32[2,8,4], index: 0, kind: input, shape index: {}]
  %s1 = inlined_call_operand.vmem [shape: f32[4,128], index: 1, kind: input, shape index: {}]
  %s2 = inlined_call_operand.hbm [shape: f32[32,128], index: 2, kind: input, shape index: {}]
  %s3 = inlined_call_operand.vmem [shape: f32[1,128], index: 3, kind: input, shape index: {}]
  %s4 = inlined_call_operand.vmem [shape: f32[1,128], index: 4, kind: input, shape index: {}]
  %s5 = inlined_call_operand.hbm [shape: f32[64,128], index: 5, kind: input, shape index: {}]
  %s6 = inlined_call_operand.vmem [shape: f32[1,128], index: 6, kind: input, shape index: {}]
  %s7 = inlined_call_operand.vmem [shape: f32[1,32], index: 7, kind: input, shape index: {}]
  %s8 = inlined_call_operand.vmem [shape: f32[1,32], index: 8, kind: input, shape index: {}]
  %s9 = inlined_call_operand.<no memory space> [shape: f32[1,1], index: 9, kind: input, shape index: {}]
  %s10 = inlined_call_operand.hbm [shape: f32[2,6], index: 10, kind: output, shape index: {}]
  %s11 = sld [smem:[#allocation0]]
  $region58: #{seq2seq_forward.1} parent=0
    _
  %s13 = ssub.s32 1, %s11
  %s14 = scalar_select 0, %s13, %s11
  %v15 = vstv %s9
  %16 = vst [vmem:[#allocation3] sm:$0x1] %v15
  $region1: #{seq2seq_forward.1} parent=0
    #allocation4 [shape = 'u8[16384]{0}', space=vmem, size = 0x4000, scoped, tag = 'input window, operand 2, single buffered']
    #allocation5 [shape = 's32[1]{0}', space=sflag, size = 0x4, scoped, tag = 'scoped memory for seq2seq_forward.1']
    #allocation6 [shape = 's32[1]{0}', space=sflag, size = 0x4, scoped, tag = 'scoped memory for seq2seq_forward.1']
    #allocation7 [shape = 'u8[32768]{0}', space=vmem, size = 0x8000, scoped, tag = 'input window, operand 5, single buffered']
    #allocation8 [shape = 's32[1]{0}', space=sflag, size = 0x4, scoped, tag = 'scoped memory for seq2seq_forward.1']
    #allocation9 [shape = 'u8[1024]{0}', space=vmem, size = 0x400, scoped, tag = 'output window, operand 0, single buffered']
    %17 = vsyncpa [#allocation5], 0
    %18 = vsyncpa [#allocation8], 0
    %19 = vsyncpa [#allocation6], 0
    // Predicated region
    $region2: #{seq2seq_forward.1} parent=1 // pred_check
      _
    $region3: #{seq2seq_forward.1} parent=1 // pred_check_branch
      %21 = sbr.rel (0) target = $region5
    $region4: #{seq2seq_forward.1} parent=1 // pred_region
      _
    $region5: #{seq2seq_forward.1} parent=1 // pred_fallthru
      _
    // Predicated region
    $region6: #{seq2seq_forward.1} parent=1 // pred_check
      _
    $region7: #{seq2seq_forward.1} parent=1 // pred_check_branch
      %23 = sbr.rel (0) target = $region9
    $region8: #{seq2seq_forward.1} parent=1 // pred_region
      _
    $region9: #{seq2seq_forward.1} parent=1 // pred_fallthru
      _
    // Predicated region
    $region10: #{seq2seq_forward.1} parent=1 // pred_check
      _
    $region11: #{seq2seq_forward.1} parent=1 // pred_check_branch
      %25 = sbr.rel (0) target = $region13
    $region12: #{seq2seq_forward.1} parent=1 // pred_region
      %27 = vsyncadd [#allocation5], 0
      %s28 = sshll.u32 %s2, 4
      %s29 = int_to_ptr.hbm [resolvable:$true] %s28
      %s30 = sshll.u32 [#allocation4], 4
      %s31 = int_to_ptr.vmem [resolvable:$true] %s30
      %36 = dma.hbm_to_vmem [thread:$0]  %s29, 512, %s31, [#allocation5], 128, 128, 8
    $region13: #{seq2seq_forward.1} parent=1 // pred_fallthru
      _
    // Predicated region
    $region14: #{seq2seq_forward.1} parent=1 // pred_check
      _
    $region15: #{seq2seq_forward.1} parent=1 // pred_check_branch
      %38 = sbr.rel (0) target = $region17
    $region16: #{seq2seq_forward.1} parent=1 // pred_region
      _
    $region17: #{seq2seq_forward.1} parent=1 // pred_fallthru
      _
    // Predicated region
    $region18: #{seq2seq_forward.1} parent=1 // pred_check
      _
    $region19: #{seq2seq_forward.1} parent=1 // pred_check_branch
      %40 = sbr.rel (0) target = $region21
    $region20: #{seq2seq_forward.1} parent=1 // pred_region
      _
    $region21: #{seq2seq_forward.1} parent=1 // pred_fallthru
      _
    // Predicated region
    $region22: #{seq2seq_forward.1} parent=1 // pred_check
      _
    $region23: #{seq2seq_forward.1} parent=1 // pred_check_branch
      %42 = sbr.rel (0) target = $region25
    $region24: #{seq2seq_forward.1} parent=1 // pred_region
      %44 = vsyncadd [#allocation8], 0
      %s45 = sshll.u32 %s5, 4
      %s46 = int_to_ptr.hbm [resolvable:$true] %s45
      %s47 = sshll.u32 [#allocation7], 4
      %s48 = int_to_ptr.vmem [resolvable:$true] %s47
      %53 = dma.hbm_to_vmem [thread:$0]  %s46, 1024, %s48, [#allocation8], 128, 128, 8
    $region25: #{seq2seq_forward.1} parent=1 // pred_fallthru
      _
    // Predicated region
    $region26: #{seq2seq_forward.1} parent=1 // pred_check
      _
    $region27: #{seq2seq_forward.1} parent=1 // pred_check_branch
      %55 = sbr.rel (0) target = $region29
    $region28: #{seq2seq_forward.1} parent=1 // pred_region
      _
    $region29: #{seq2seq_forward.1} parent=1 // pred_fallthru
      _
    // Predicated region
    $region30: #{seq2seq_forward.1} parent=1 // pred_check
      _
    $region31: #{seq2seq_forward.1} parent=1 // pred_check_branch
      %57 = sbr.rel (0) target = $region33
    $region32: #{seq2seq_forward.1} parent=1 // pred_region
      _
    $region33: #{seq2seq_forward.1} parent=1 // pred_fallthru
      _
    // Predicated region
    $region34: #{seq2seq_forward.1} parent=1 // pred_check
      _
    $region35: #{seq2seq_forward.1} parent=1 // pred_check_branch
      %59 = sbr.rel (0) target = $region37
    $region36: #{seq2seq_forward.1} parent=1 // pred_region
      _
    $region37: #{seq2seq_forward.1} parent=1 // pred_fallthru
      _
    // Predicated region
    $region38: #{seq2seq_forward.1} parent=1 // pred_check
      _
    $region39: #{seq2seq_forward.1} parent=1 // pred_check_branch
      %61 = sbr.rel (0) target = $region41
    $region40: #{seq2seq_forward.1} parent=1 // pred_region
      _
    $region41: #{seq2seq_forward.1} parent=1 // pred_fallthru
      _
    // Predicated region
    $region42: #{seq2seq_forward.1} parent=1 // pred_check
      _
    $region43: #{seq2seq_forward.1} parent=1 // pred_check_branch
      %63 = sbr.rel (0) target = $region45
    $region44: #{seq2seq_forward.1} parent=1 // pred_region
      %65 = dma.done [#allocation5], 512
    $region45: #{seq2seq_forward.1} parent=1 // pred_fallthru
      _
    // Predicated region
    $region46: #{seq2seq_forward.1} parent=1 // pred_check
      _
    $region47: #{seq2seq_forward.1} parent=1 // pred_check_branch
      %67 = sbr.rel (0) target = $region49
    $region48: #{seq2seq_forward.1} parent=1 // pred_region
      %69 = dma.done [#allocation8], 1024
    $region49: #{seq2seq_forward.1} parent=1 // pred_fallthru
      _
    %v70 = vld [vmem:[%s1] sm:$0xf]
    %v71 = vld [vmem:[#allocation4] sm:$0xff]
    %v72 = vld [vmem:[#allocation4 + $0x8] sm:$0xff]
    %v73 = vld [vmem:[#allocation4 + $0x10] sm:$0xff]
    %v74 = vld [vmem:[#allocation4 + $0x18] sm:$0xff]
    %v75 = vld [vmem:[%s3] sm:$0x1]
    %v76 = vld [vmem:[%s4] sm:$0x1]
    %v77 = vld [vmem:[#allocation7] sm:$0xff]
    %v78 = vld [vmem:[#allocation7 + $0x8] sm:$0xff]
    %v79 = vld [vmem:[#allocation7 + $0x10] sm:$0xff]
    %v80 = vld [vmem:[#allocation7 + $0x18] sm:$0xff]
    %v81 = vld [vmem:[#allocation7 + $0x20] sm:$0xff]
    %v82 = vld [vmem:[#allocation7 + $0x28] sm:$0xff]
    %v83 = vld [vmem:[#allocation7 + $0x30] sm:$0xff]
    %v84 = vld [vmem:[#allocation7 + $0x38] sm:$0xff]
    %v85 = vld [vmem:[%s6] sm:$0x1]
    %v86 = vld [vmem:[%s7] sm:$0x1]
    %v87 = vld [vmem:[%s8] sm:$0x1]
    %v88 = vld [vmem:[#allocation3] sm:$0x1]
    %v89 = vld [vmem:[%s0] sm:$0xff]
    %v90 = vld [vmem:[%s0 + $0x8] sm:$0xff]
    %v91 = vlaneseq
    %v92 = vand.u32 %v91, 127
    %vm93 = vcmp.ge.s32.totalorder %v92, 96
    %v94 = vsel %vm93, 2.0, 1.0
    %v95 = vsel %vm93, -1.0, 0.0
    %v97 = vperm.slane %v75, 0
    %vm99 = vcmask 31744
    %v101 = vsel %vm99, %v89, 0
    %v104 = vsel %vm99, %v90, 0
    %vm106 = vcmask 1043456
    %v108 = vsel %vm106, %v70, 0
    %110 = vmatpush.msra.mxu0 0.0
    %111 = vmatpush.msra.mxu0 0.0
    %112 = vmatpush.msra.mxu0 0.0
    %113 = vmatpush.msra.mxu0 0.0
    %114 = vmatpush.msra.mxu0 0.0
    %115 = vmatpush.msra.mxu0 0.0
    %116 = vmatpush.msra.mxu0 0.0
    %117 = vmatpush.msra.mxu0 0.0
    %118 = vmatpush.msra.mxu0 0.0
    %119 = vmatpush.msra.mxu0 0.0
    %120 = vmatpush.msra.mxu0 0.0
    %121 = vmatpush.msra.mxu0 0.0
    %122 = vmatpush.msra.mxu0 0.0
    %123 = vmatpush.msra.mxu0 0.0
    %124 = vmatpush.msra.mxu0 0.0
    %125 = vmatpush.msra.mxu0 %v108
    %126 = vmatmul.f32.gmra.mxu0 %v101
    %v127 = vpop.f32.mrf.mxu0
    %v128 = vadd.f32 %v97, %v127
    %129 = vmatmul.f32.gmra.mxu0 %v104
    %v130 = vpop.f32.mrf.mxu0
    %v131 = vadd.f32 %v97, %v130
    %132 = vdwg.mxu0
    %vm133 = vcmask 261120
    %v135 = vsel %vm133, 0.0, 0
    %137 = vmatpush.msra.mxu0 0.0
    %138 = vmatpush.msra.mxu0 0.0
    %139 = vmatpush.msra.mxu0 0.0
    %140 = vmatpush.msra.mxu0 0.0
    %141 = vmatpush.msra.mxu0 0.0
    %142 = vmatpush.msra.mxu0 0.0
    %143 = vmatpush.msra.mxu0 0.0
    %144 = vmatpush.msra.mxu0 0.0
    %145 = vmatpush.msra.mxu0 0.0
    %146 = vmatpush.msra.mxu0 0.0
    %147 = vmatpush.msra.mxu0 0.0
    %148 = vmatpush.msra.mxu0 0.0
    %149 = vmatpush.msra.mxu0 %v74
    %150 = vmatpush.msra.mxu0 %v73
    %151 = vmatpush.msra.mxu0 %v72
    %152 = vmatpush.msra.mxu0 %v71
    %153 = vmatmul.f32.gmra.mxu0 %v135
    %v154 = vpop.f32.mrf.mxu0
    %v155 = vadd.f32 0.0, %v154
    %156 = vdwg.mxu0
    %v158 = vrot.slane %v155, 1
    %v161 = vadd.f32 %v128, %v155
    %v162 = vadd.f32 %v131, %v158
    %v163 = vmul.f32 %v161, %v94
    %v164 = vmul.f32 %v162, %v94
    %v165 = vxor.u32 %v163, 2147483648
    %v166 = vxor.u32 %v164, 2147483648
    %v167 = vmul.f32 %v165, 1.442695
    %v168 = vpow.pop %v167
    %v169 = vmul.f32 %v166, 1.442695
    %v170 = vpow.pop %v169
    %v171 = vadd.f32 %v168, 1.0
    %v172 = vadd.f32 %v170, 1.0
    %v173 = vrcp.pop %v171
    %v174 = vmul.f32 %v171, %v173
    %v175 = vsub.f32 1.0, %v174
    %v176 = vmul.f32 %v173, %v175
    %v177 = vadd.f32 %v173, %v176
    %vm178 = vweird.f32 %v171
    %vm179 = vweird.f32 %v173
    %vm180 = vmor %vm178, %vm179
    %v181 = vsel %vm180, %v173, %v177
    %v182 = vand.u32 2147483647, %v171
    %vm183 = vcmp.eq.f32.partialorder %v182, 8.507059e+37
    %v184 = vand.u32 %v171, 2147483648
    %v185 = vor.u32 1.1754944e-38, %v184
    %v186 = vsel %vm183, %v185, %v181
    %v187 = vmul.f32 1.0, %v186
    %v188 = vrcp.pop %v172
    %v189 = vmul.f32 %v172, %v188
    %v190 = vsub.f32 1.0, %v189
    %v191 = vmul.f32 %v188, %v190
    %v192 = vadd.f32 %v188, %v191
    %vm193 = vweird.f32 %v172
    %vm194 = vweird.f32 %v188
    %vm195 = vmor %vm193, %vm194
    %v196 = vsel %vm195, %v188, %v192
    %v197 = vand.u32 2147483647, %v172
    %vm198 = vcmp.eq.f32.partialorder %v197, 8.507059e+37
    %v199 = vand.u32 %v172, 2147483648
    %v200 = vor.u32 1.1754944e-38, %v199
    %v201 = vsel %vm198, %v200, %v196
    %v202 = vmul.f32 1.0, %v201
    %v203 = vmul.f32 %v187, %v94
    %v204 = vmul.f32 %v202, %v94
    %v205 = vadd.f32 %v203, %v95
    %v206 = vadd.f32 %v204, %v95
    %v207 = vmul.f32 %v205, 0.0
    %v208 = vmul.f32 %v206, 0.0
    %211 = vrot.lane.b32.xlu0 %v205, 32
    %v212 = vpop.permute.xlu0 %211
    %213 = vrot.lane.b32.xlu0 %v206, 32
    %v214 = vpop.permute.xlu0 %213
    %v217 = vmul.f32 %v205, %v212
    %v218 = vmul.f32 %v206, %v214
    %221 = vrot.lane.b32.xlu0 %v217, 32
    %v222 = vpop.permute.xlu0 %221
    %223 = vrot.lane.b32.xlu0 %v218, 32
    %v224 = vpop.permute.xlu0 %223
    %v227 = vadd.f32 %v207, %v222
    %v228 = vadd.f32 %v208, %v224
    %v229 = vtanh.pop %v227
    %v230 = vtanh.pop %v228
    %233 = vrot.lane.b32.xlu0 %v229, 32
    %v234 = vpop.permute.xlu0 %233
    %235 = vrot.lane.b32.xlu0 %v230, 32
    %v236 = vpop.permute.xlu0 %235
    %v239 = vmul.f32 %v205, %v234
    %v240 = vmul.f32 %v206, %v236
    %243 = vrot.lane.b32.xlu0 %v239, 64
    %v244 = vpop.permute.xlu0 %243
    %245 = vrot.lane.b32.xlu0 %v240, 64
    %v246 = vpop.permute.xlu0 %245
    %vm249 = vcmask 253952
    %250 = vst.msk [vmem:[#allocation2] sm:$0x1] %vm249, %v244
    %251 = vst.msk [vmem:[#allocation2 + $0x8] sm:$0x1] %vm249, %v246
    %v252 = vrot.slane %v240, 7
    %vm253 = vcmask 1041409
    %v254 = vsel %vm253, %v252, %v239
    %255 = vrot.lane.b32.xlu0 %v254, 64
    %v256 = vpop.permute.xlu0 %255
    %v257 = vsel %vm133, %v256, 0
    %259 = vmatpush.msra.mxu0 0.0
    %260 = vmatpush.msra.mxu0 0.0
    %261 = vmatpush.msra.mxu0 0.0
    %262 = vmatpush.msra.mxu0 0.0
    %263 = vmatpush.msra.mxu0 0.0
    %264 = vmatpush.msra.mxu0 0.0
    %265 = vmatpush.msra.mxu0 0.0
    %266 = vmatpush.msra.mxu0 0.0
    %267 = vmatpush.msra.mxu0 0.0
    %268 = vmatpush.msra.mxu0 0.0
    %269 = vmatpush.msra.mxu0 0.0
    %270 = vmatpush.msra.mxu0 0.0
    %271 = vmatpush.msra.mxu0 %v74
    %272 = vmatpush.msra.mxu0 %v73
    %273 = vmatpush.msra.mxu0 %v72
    %274 = vmatpush.msra.mxu0 %v71
    %275 = vmatmul.f32.gmra.mxu0 %v257
    %v276 = vpop.f32.mrf.mxu0
    %v277 = vadd.f32 0.0, %v276
    %278 = vdwg.mxu0
    %v280 = vrot.slane %v277, 7
    %v283 = vadd.f32 %v128, %v280
    %v284 = vadd.f32 %v131, %v277
    %v285 = vmul.f32 %v283, %v94
    %v286 = vmul.f32 %v284, %v94
    %v287 = vxor.u32 %v285, 2147483648
    %v288 = vxor.u32 %v286, 2147483648
    %v289 = vmul.f32 %v287, 1.442695
    %v290 = vpow.pop %v289
    %v291 = vmul.f32 %v288, 1.442695
    %v292 = vpow.pop %v291
    %v293 = vadd.f32 %v290, 1.0
    %v294 = vadd.f32 %v292, 1.0
    %v295 = vrcp.pop %v293
    %v296 = vmul.f32 %v293, %v295
    %v297 = vsub.f32 1.0, %v296
    %v298 = vmul.f32 %v295, %v297
    %v299 = vadd.f32 %v295, %v298
    %vm300 = vweird.f32 %v293
    %vm301 = vweird.f32 %v295
    %vm302 = vmor %vm300, %vm301
    %v303 = vsel %vm302, %v295, %v299
    %v304 = vand.u32 2147483647, %v293
    %vm305 = vcmp.eq.f32.partialorder %v304, 8.507059e+37
    %v306 = vand.u32 %v293, 2147483648
    %v307 = vor.u32 1.1754944e-38, %v306
    %v308 = vsel %vm305, %v307, %v303
    %v309 = vmul.f32 1.0, %v308
    %v310 = vrcp.pop %v294
    %v311 = vmul.f32 %v294, %v310
    %v312 = vsub.f32 1.0, %v311
    %v313 = vmul.f32 %v310, %v312
    %v314 = vadd.f32 %v310, %v313
    %vm315 = vweird.f32 %v294
    %vm316 = vweird.f32 %v310
    %vm317 = vmor %vm315, %vm316
    %v318 = vsel %vm317, %v310, %v314
    %v319 = vand.u32 2147483647, %v294
    %vm320 = vcmp.eq.f32.partialorder %v319, 8.507059e+37
    %v321 = vand.u32 %v294, 2147483648
    %v322 = vor.u32 1.1754944e-38, %v321
    %v323 = vsel %vm320, %v322, %v318
    %v324 = vmul.f32 1.0, %v323
    %v325 = vmul.f32 %v309, %v94
    %v326 = vmul.f32 %v324, %v94
    %v327 = vadd.f32 %v325, %v95
    %v328 = vadd.f32 %v326, %v95
    %v331 = vrot.slane %v227, 7
    %v332 = vrot.slane %v228, 7
    %v335 = vmul.f32 %v327, %v331
    %v336 = vmul.f32 %v328, %v332
    %339 = vrot.lane.b32.xlu0 %v327, 32
    %v340 = vpop.permute.xlu0 %339
    %341 = vrot.lane.b32.xlu0 %v328, 32
    %v342 = vpop.permute.xlu0 %341
    %v345 = vmul.f32 %v327, %v340
    %v346 = vmul.f32 %v328, %v342
    %349 = vrot.lane.b32.xlu0 %v345, 32
    %v350 = vpop.permute.xlu0 %349
    %351 = vrot.lane.b32.xlu0 %v346, 32
    %v352 = vpop.permute.xlu0 %351
    %v355 = vadd.f32 %v335, %v350
    %v356 = vadd.f32 %v336, %v352
    %v357 = vtanh.pop %v355
    %v358 = vtanh.pop %v356
    %361 = vrot.lane.b32.xlu0 %v357, 32
    %v362 = vpop.permute.xlu0 %361
    %363 = vrot.lane.b32.xlu0 %v358, 32
    %v364 = vpop.permute.xlu0 %363
    %v367 = vmul.f32 %v327, %v362
    %v368 = vmul.f32 %v328, %v364
    %371 = vrot.lane.b32.xlu0 %v367, 64
    %v372 = vpop.permute.xlu0 %371
    %373 = vrot.lane.b32.xlu0 %v368, 64
    %v374 = vpop.permute.xlu0 %373
    %vm377 = vcmask 254977
    %378 = vst.msk [vmem:[#allocation2] sm:$0x2] %vm377, %v372
    %379 = vst.msk [vmem:[#allocation2 + $0x8] sm:$0x2] %vm377, %v374
    %v380 = vrot.slane %v367, 1
    %v381 = vsel %vm253, %v368, %v380
    %382 = vrot.lane.b32.xlu0 %v381, 64
    %v383 = vpop.permute.xlu0 %382
    %v384 = vsel %vm133, %v383, 0
    %386 = vmatpush.msra.mxu0 0.0
    %387 = vmatpush.msra.mxu0 0.0
    %388 = vmatpush.msra.mxu0 0.0
    %389 = vmatpush.msra.mxu0 0.0
    %390 = vmatpush.msra.mxu0 0.0
    %391 = vmatpush.msra.mxu0 0.0
    %392 = vmatpush.msra.mxu0 0.0
    %393 = vmatpush.msra.mxu0 0.0
    %394 = vmatpush.msra.mxu0 0.0
    %395 = vmatpush.msra.mxu0 0.0
    %396 = vmatpush.msra.mxu0 0.0
    %397 = vmatpush.msra.mxu0 0.0
    %398 = vmatpush.msra.mxu0 %v74
    %399 = vmatpush.msra.mxu0 %v73
    %400 = vmatpush.msra.mxu0 %v72
    %401 = vmatpush.msra.mxu0 %v71
    %402 = vmatmul.f32.gmra.mxu0 %v384
    %v403 = vpop.f32.mrf.mxu0
    %v404 = vadd.f32 0.0, %v403
    %405 = vdwg.mxu0
    %v407 = vrot.slane %v404, 6
    %v408 = vrot.slane %v404, 7
    %v411 = vadd.f32 %v128, %v407
    %v412 = vadd.f32 %v131, %v408
    %v413 = vmul.f32 %v411, %v94
    %v414 = vmul.f32 %v412, %v94
    %v415 = vxor.u32 %v413, 2147483648
    %v416 = vxor.u32 %v414, 2147483648
    %v417 = vmul.f32 %v415, 1.442695
    %v418 = vpow.pop %v417
    %v419 = vmul.f32 %v416, 1.442695
    %v420 = vpow.pop %v419
    %v421 = vadd.f32 %v418, 1.0
    %v422 = vadd.f32 %v420, 1.0
    %v423 = vrcp.pop %v421
    %v424 = vmul.f32 %v421, %v423
    %v425 = vsub.f32 1.0, %v424
    %v426 = vmul.f32 %v423, %v425
    %v427 = vadd.f32 %v423, %v426
    %vm428 = vweird.f32 %v421
    %vm429 = vweird.f32 %v423
    %vm430 = vmor %vm428, %vm429
    %v431 = vsel %vm430, %v423, %v427
    %v432 = vand.u32 2147483647, %v421
    %vm433 = vcmp.eq.f32.partialorder %v432, 8.507059e+37
    %v434 = vand.u32 %v421, 2147483648
    %v435 = vor.u32 1.1754944e-38, %v434
    %v436 = vsel %vm433, %v435, %v431
    %v437 = vmul.f32 1.0, %v436
    %v438 = vrcp.pop %v422
    %v439 = vmul.f32 %v422, %v438
    %v440 = vsub.f32 1.0, %v439
    %v441 = vmul.f32 %v438, %v440
    %v442 = vadd.f32 %v438, %v441
    %vm443 = vweird.f32 %v422
    %vm444 = vweird.f32 %v438
    %vm445 = vmor %vm443, %vm444
    %v446 = vsel %vm445, %v438, %v442
    %v447 = vand.u32 2147483647, %v422
    %vm448 = vcmp.eq.f32.partialorder %v447, 8.507059e+37
    %v449 = vand.u32 %v422, 2147483648
    %v450 = vor.u32 1.1754944e-38, %v449
    %v451 = vsel %vm448, %v450, %v446
    %v452 = vmul.f32 1.0, %v451
    %v453 = vmul.f32 %v437, %v94
    %v454 = vmul.f32 %v452, %v94
    %v455 = vadd.f32 %v453, %v95
    %v456 = vadd.f32 %v454, %v95
    %v459 = vrot.slane %v355, 7
    %v460 = vrot.slane %v356, 7
    %v463 = vmul.f32 %v455, %v459
    %v464 = vmul.f32 %v456, %v460
    %467 = vrot.lane.b32.xlu0 %v455, 32
    %v468 = vpop.permute.xlu0 %467
    %469 = vrot.lane.b32.xlu0 %v456, 32
    %v470 = vpop.permute.xlu0 %469
    %v473 = vmul.f32 %v455, %v468
    %v474 = vmul.f32 %v456, %v470
    %477 = vrot.lane.b32.xlu0 %v473, 32
    %v478 = vpop.permute.xlu0 %477
    %479 = vrot.lane.b32.xlu0 %v474, 32
    %v480 = vpop.permute.xlu0 %479
    %v483 = vadd.f32 %v463, %v478
    %v484 = vadd.f32 %v464, %v480
    %v485 = vtanh.pop %v483
    %v486 = vtanh.pop %v484
    %489 = vrot.lane.b32.xlu0 %v485, 32
    %v490 = vpop.permute.xlu0 %489
    %491 = vrot.lane.b32.xlu0 %v486, 32
    %v492 = vpop.permute.xlu0 %491
    %v495 = vmul.f32 %v455, %v490
    %v496 = vmul.f32 %v456, %v492
    %499 = vrot.lane.b32.xlu0 %v495, 64
    %v500 = vpop.permute.xlu0 %499
    %501 = vrot.lane.b32.xlu0 %v496, 64
    %v502 = vpop.permute.xlu0 %501
    %vm505 = vcmask 256002
    %506 = vst.msk [vmem:[#allocation2] sm:$0x4] %vm505, %v500
    %507 = vst.msk [vmem:[#allocation2 + $0x8] sm:$0x4] %vm505, %v502
    %v508 = vrot.slane %v495, 2
    %v509 = vrot.slane %v496, 1
    %v510 = vsel %vm253, %v509, %v508
    %511 = vrot.lane.b32.xlu0 %v510, 64
    %v512 = vpop.permute.xlu0 %511
    %v513 = vsel %vm133, %v512, 0
    %515 = vmatpush.msra.mxu0 0.0
    %516 = vmatpush.msra.mxu0 0.0
    %517 = vmatpush.msra.mxu0 0.0
    %518 = vmatpush.msra.mxu0 0.0
    %519 = vmatpush.msra.mxu0 0.0
    %520 = vmatpush.msra.mxu0 0.0
    %521 = vmatpush.msra.mxu0 0.0
    %522 = vmatpush.msra.mxu0 0.0
    %523 = vmatpush.msra.mxu0 0.0
    %524 = vmatpush.msra.mxu0 0.0
    %525 = vmatpush.msra.mxu0 0.0
    %526 = vmatpush.msra.mxu0 0.0
    %527 = vmatpush.msra.mxu0 %v74
    %528 = vmatpush.msra.mxu0 %v73
    %529 = vmatpush.msra.mxu0 %v72
    %530 = vmatpush.msra.mxu0 %v71
    %531 = vmatmul.f32.gmra.mxu0 %v513
    %v532 = vpop.f32.mrf.mxu0
    %v533 = vadd.f32 0.0, %v532
    %534 = vdwg.mxu0
    %v536 = vrot.slane %v533, 5
    %v537 = vrot.slane %v533, 6
    %v540 = vadd.f32 %v128, %v536
    %v541 = vadd.f32 %v131, %v537
    %v542 = vmul.f32 %v540, %v94
    %v543 = vmul.f32 %v541, %v94
    %v544 = vxor.u32 %v542, 2147483648
    %v545 = vxor.u32 %v543, 2147483648
    %v546 = vmul.f32 %v544, 1.442695
    %v547 = vpow.pop %v546
    %v548 = vmul.f32 %v545, 1.442695
    %v549 = vpow.pop %v548
    %v550 = vadd.f32 %v547, 1.0
    %v551 = vadd.f32 %v549, 1.0
    %v552 = vrcp.pop %v550
    %v553 = vmul.f32 %v550, %v552
    %v554 = vsub.f32 1.0, %v553
    %v555 = vmul.f32 %v552, %v554
    %v556 = vadd.f32 %v552, %v555
    %vm557 = vweird.f32 %v550
    %vm558 = vweird.f32 %v552
    %vm559 = vmor %vm557, %vm558
    %v560 = vsel %vm559, %v552, %v556
    %v561 = vand.u32 2147483647, %v550
    %vm562 = vcmp.eq.f32.partialorder %v561, 8.507059e+37
    %v563 = vand.u32 %v550, 2147483648
    %v564 = vor.u32 1.1754944e-38, %v563
    %v565 = vsel %vm562, %v564, %v560
    %v566 = vmul.f32 1.0, %v565
    %v567 = vrcp.pop %v551
    %v568 = vmul.f32 %v551, %v567
    %v569 = vsub.f32 1.0, %v568
    %v570 = vmul.f32 %v567, %v569
    %v571 = vadd.f32 %v567, %v570
    %vm572 = vweird.f32 %v551
    %vm573 = vweird.f32 %v567
    %vm574 = vmor %vm572, %vm573
    %v575 = vsel %vm574, %v567, %v571
    %v576 = vand.u32 2147483647, %v551
    %vm577 = vcmp.eq.f32.partialorder %v576, 8.507059e+37
    %v578 = vand.u32 %v551, 2147483648
    %v579 = vor.u32 1.1754944e-38, %v578
    %v580 = vsel %vm577, %v579, %v575
    %v581 = vmul.f32 1.0, %v580
    %v582 = vmul.f32 %v566, %v94
    %v583 = vmul.f32 %v581, %v94
    %v584 = vadd.f32 %v582, %v95
    %v585 = vadd.f32 %v583, %v95
    %v588 = vrot.slane %v483, 7
    %v589 = vrot.slane %v484, 7
    %v592 = vmul.f32 %v584, %v588
    %v593 = vmul.f32 %v585, %v589
    %596 = vrot.lane.b32.xlu0 %v584, 32
    %v597 = vpop.permute.xlu0 %596
    %598 = vrot.lane.b32.xlu0 %v585, 32
    %v599 = vpop.permute.xlu0 %598
    %v602 = vmul.f32 %v584, %v597
    %v603 = vmul.f32 %v585, %v599
    %606 = vrot.lane.b32.xlu0 %v602, 32
    %v607 = vpop.permute.xlu0 %606
    %608 = vrot.lane.b32.xlu0 %v603, 32
    %v609 = vpop.permute.xlu0 %608
    %v612 = vadd.f32 %v592, %v607
    %v613 = vadd.f32 %v593, %v609
    %v614 = vtanh.pop %v612
    %v615 = vtanh.pop %v613
    %618 = vrot.lane.b32.xlu0 %v614, 32
    %v619 = vpop.permute.xlu0 %618
    %620 = vrot.lane.b32.xlu0 %v615, 32
    %v621 = vpop.permute.xlu0 %620
    %v624 = vmul.f32 %v584, %v619
    %v625 = vmul.f32 %v585, %v621
    %628 = vrot.lane.b32.xlu0 %v624, 64
    %v629 = vpop.permute.xlu0 %628
    %630 = vrot.lane.b32.xlu0 %v625, 64
    %v631 = vpop.permute.xlu0 %630
    %vm634 = vcmask 257027
    %635 = vst.msk [vmem:[#allocation2] sm:$0x8] %vm634, %v629
    %636 = vst.msk [vmem:[#allocation2 + $0x8] sm:$0x8] %vm634, %v631
    %v637 = vrot.slane %v624, 3
    %v638 = vrot.slane %v625, 2
    %v639 = vsel %vm253, %v638, %v637
    %640 = vrot.lane.b32.xlu0 %v639, 64
    %v641 = vpop.permute.xlu0 %640
    %v642 = vsel %vm133, %v641, 0
    %644 = vmatpush.msra.mxu0 0.0
    %645 = vmatpush.msra.mxu0 0.0
    %646 = vmatpush.msra.mxu0 0.0
    %647 = vmatpush.msra.mxu0 0.0
    %648 = vmatpush.msra.mxu0 0.0
    %649 = vmatpush.msra.mxu0 0.0
    %650 = vmatpush.msra.mxu0 0.0
    %651 = vmatpush.msra.mxu0 0.0
    %652 = vmatpush.msra.mxu0 0.0
    %653 = vmatpush.msra.mxu0 0.0
    %654 = vmatpush.msra.mxu0 0.0
    %655 = vmatpush.msra.mxu0 0.0
    %656 = vmatpush.msra.mxu0 %v74
    %657 = vmatpush.msra.mxu0 %v73
    %658 = vmatpush.msra.mxu0 %v72
    %659 = vmatpush.msra.mxu0 %v71
    %660 = vmatmul.f32.gmra.mxu0 %v642
    %v661 = vpop.f32.mrf.mxu0
    %v662 = vadd.f32 0.0, %v661
    %663 = vdwg.mxu0
    %v665 = vrot.slane %v662, 4
    %v666 = vrot.slane %v662, 5
    %v669 = vadd.f32 %v128, %v665
    %v670 = vadd.f32 %v131, %v666
    %v671 = vmul.f32 %v669, %v94
    %v672 = vmul.f32 %v670, %v94
    %v673 = vxor.u32 %v671, 2147483648
    %v674 = vxor.u32 %v672, 2147483648
    %v675 = vmul.f32 %v673, 1.442695
    %v676 = vpow.pop %v675
    %v677 = vmul.f32 %v674, 1.442695
    %v678 = vpow.pop %v677
    %v679 = vadd.f32 %v676, 1.0
    %v680 = vadd.f32 %v678, 1.0
    %v681 = vrcp.pop %v679
    %v682 = vmul.f32 %v679, %v681
    %v683 = vsub.f32 1.0, %v682
    %v684 = vmul.f32 %v681, %v683
    %v685 = vadd.f32 %v681, %v684
    %vm686 = vweird.f32 %v679
    %vm687 = vweird.f32 %v681
    %vm688 = vmor %vm686, %vm687
    %v689 = vsel %vm688, %v681, %v685
    %v690 = vand.u32 2147483647, %v679
    %vm691 = vcmp.eq.f32.partialorder %v690, 8.507059e+37
    %v692 = vand.u32 %v679, 2147483648
    %v693 = vor.u32 1.1754944e-38, %v692
    %v694 = vsel %vm691, %v693, %v689
    %v695 = vmul.f32 1.0, %v694
    %v696 = vrcp.pop %v680
    %v697 = vmul.f32 %v680, %v696
    %v698 = vsub.f32 1.0, %v697
    %v699 = vmul.f32 %v696, %v698
    %v700 = vadd.f32 %v696, %v699
    %vm701 = vweird.f32 %v680
    %vm702 = vweird.f32 %v696
    %vm703 = vmor %vm701, %vm702
    %v704 = vsel %vm703, %v696, %v700
    %v705 = vand.u32 2147483647, %v680
    %vm706 = vcmp.eq.f32.partialorder %v705, 8.507059e+37
    %v707 = vand.u32 %v680, 2147483648
    %v708 = vor.u32 1.1754944e-38, %v707
    %v709 = vsel %vm706, %v708, %v704
    %v710 = vmul.f32 1.0, %v709
    %v711 = vmul.f32 %v695, %v94
    %v712 = vmul.f32 %v710, %v94
    %v713 = vadd.f32 %v711, %v95
    %v714 = vadd.f32 %v712, %v95
    %v717 = vrot.slane %v612, 7
    %v718 = vrot.slane %v613, 7
    %v721 = vmul.f32 %v713, %v717
    %v722 = vmul.f32 %v714, %v718
    %725 = vrot.lane.b32.xlu0 %v713, 32
    %v726 = vpop.permute.xlu0 %725
    %727 = vrot.lane.b32.xlu0 %v714, 32
    %v728 = vpop.permute.xlu0 %727
    %v731 = vmul.f32 %v713, %v726
    %v732 = vmul.f32 %v714, %v728
    %735 = vrot.lane.b32.xlu0 %v731, 32
    %v736 = vpop.permute.xlu0 %735
    %737 = vrot.lane.b32.xlu0 %v732, 32
    %v738 = vpop.permute.xlu0 %737
    %v741 = vadd.f32 %v721, %v736
    %v742 = vadd.f32 %v722, %v738
    %v743 = vtanh.pop %v741
    %v744 = vtanh.pop %v742
    %747 = vrot.lane.b32.xlu0 %v743, 32
    %v748 = vpop.permute.xlu0 %747
    %749 = vrot.lane.b32.xlu0 %v744, 32
    %v750 = vpop.permute.xlu0 %749
    %v753 = vmul.f32 %v713, %v748
    %v754 = vmul.f32 %v714, %v750
    %757 = vrot.lane.b32.xlu0 %v753, 64
    %v758 = vpop.permute.xlu0 %757
    %759 = vrot.lane.b32.xlu0 %v754, 64
    %v760 = vpop.permute.xlu0 %759
    %vm763 = vcmask 258052
    %764 = vst.msk [vmem:[#allocation2] sm:$0x10] %vm763, %v758
    %765 = vst.msk [vmem:[#allocation2 + $0x8] sm:$0x10] %vm763, %v760
    %v766 = vrot.slane %v753, 4
    %v767 = vrot.slane %v754, 3
    %v768 = vsel %vm253, %v767, %v766
    %769 = vrot.lane.b32.xlu0 %v768, 64
    %v770 = vpop.permute.xlu0 %769
    %v771 = vsel %vm133, %v770, 0
    %773 = vmatpush.msra.mxu0 0.0
    %774 = vmatpush.msra.mxu0 0.0
    %775 = vmatpush.msra.mxu0 0.0
    %776 = vmatpush.msra.mxu0 0.0
    %777 = vmatpush.msra.mxu0 0.0
    %778 = vmatpush.msra.mxu0 0.0
    %779 = vmatpush.msra.mxu0 0.0
    %780 = vmatpush.msra.mxu0 0.0
    %781 = vmatpush.msra.mxu0 0.0
    %782 = vmatpush.msra.mxu0 0.0
    %783 = vmatpush.msra.mxu0 0.0
    %784 = vmatpush.msra.mxu0 0.0
    %785 = vmatpush.msra.mxu0 %v74
    %786 = vmatpush.msra.mxu0 %v73
    %787 = vmatpush.msra.mxu0 %v72
    %788 = vmatpush.msra.mxu0 %v71
    %789 = vmatmul.f32.gmra.mxu0 %v771
    %v790 = vpop.f32.mrf.mxu0
    %v791 = vadd.f32 0.0, %v790
    %792 = vdwg.mxu0
    %v794 = vrot.slane %v791, 3
    %v795 = vrot.slane %v791, 4
    %v798 = vadd.f32 %v128, %v794
    %v799 = vadd.f32 %v131, %v795
    %v800 = vmul.f32 %v798, %v94
    %v801 = vmul.f32 %v799, %v94
    %v802 = vxor.u32 %v800, 2147483648
    %v803 = vxor.u32 %v801, 2147483648
    %v804 = vmul.f32 %v802, 1.442695
    %v805 = vpow.pop %v804
    %v806 = vmul.f32 %v803, 1.442695
    %v807 = vpow.pop %v806
    %v808 = vadd.f32 %v805, 1.0
    %v809 = vadd.f32 %v807, 1.0
    %v810 = vrcp.pop %v808
    %v811 = vmul.f32 %v808, %v810
    %v812 = vsub.f32 1.0, %v811
    %v813 = vmul.f32 %v810, %v812
    %v814 = vadd.f32 %v810, %v813
    %vm815 = vweird.f32 %v808
    %vm816 = vweird.f32 %v810
    %vm817 = vmor %vm815, %vm816
    %v818 = vsel %vm817, %v810, %v814
    %v819 = vand.u32 2147483647, %v808
    %vm820 = vcmp.eq.f32.partialorder %v819, 8.507059e+37
    %v821 = vand.u32 %v808, 2147483648
    %v822 = vor.u32 1.1754944e-38, %v821
    %v823 = vsel %vm820, %v822, %v818
    %v824 = vmul.f32 1.0, %v823
    %v825 = vrcp.pop %v809
    %v826 = vmul.f32 %v809, %v825
    %v827 = vsub.f32 1.0, %v826
    %v828 = vmul.f32 %v825, %v827
    %v829 = vadd.f32 %v825, %v828
    %vm830 = vweird.f32 %v809
    %vm831 = vweird.f32 %v825
    %vm832 = vmor %vm830, %vm831
    %v833 = vsel %vm832, %v825, %v829
    %v834 = vand.u32 2147483647, %v809
    %vm835 = vcmp.eq.f32.partialorder %v834, 8.507059e+37
    %v836 = vand.u32 %v809, 2147483648
    %v837 = vor.u32 1.1754944e-38, %v836
    %v838 = vsel %vm835, %v837, %v833
    %v839 = vmul.f32 1.0, %v838
    %v840 = vmul.f32 %v824, %v94
    %v841 = vmul.f32 %v839, %v94
    %v842 = vadd.f32 %v840, %v95
    %v843 = vadd.f32 %v841, %v95
    %v846 = vrot.slane %v741, 7
    %v847 = vrot.slane %v742, 7
    %v850 = vmul.f32 %v842, %v846
    %v851 = vmul.f32 %v843, %v847
    %854 = vrot.lane.b32.xlu0 %v842, 32
    %v855 = vpop.permute.xlu0 %854
    %856 = vrot.lane.b32.xlu0 %v843, 32
    %v857 = vpop.permute.xlu0 %856
    %v860 = vmul.f32 %v842, %v855
    %v861 = vmul.f32 %v843, %v857
    %864 = vrot.lane.b32.xlu0 %v860, 32
    %v865 = vpop.permute.xlu0 %864
    %866 = vrot.lane.b32.xlu0 %v861, 32
    %v867 = vpop.permute.xlu0 %866
    %v870 = vadd.f32 %v850, %v865
    %v871 = vadd.f32 %v851, %v867
    %v872 = vtanh.pop %v870
    %v873 = vtanh.pop %v871
    %876 = vrot.lane.b32.xlu0 %v872, 32
    %v877 = vpop.permute.xlu0 %876
    %878 = vrot.lane.b32.xlu0 %v873, 32
    %v879 = vpop.permute.xlu0 %878
    %v882 = vmul.f32 %v842, %v877
    %v883 = vmul.f32 %v843, %v879
    %886 = vrot.lane.b32.xlu0 %v882, 64
    %v887 = vpop.permute.xlu0 %886
    %888 = vrot.lane.b32.xlu0 %v883, 64
    %v889 = vpop.permute.xlu0 %888
    %vm892 = vcmask 259077
    %893 = vst.msk [vmem:[#allocation2] sm:$0x20] %vm892, %v887
    %894 = vst.msk [vmem:[#allocation2 + $0x8] sm:$0x20] %vm892, %v889
    %v895 = vrot.slane %v882, 5
    %v896 = vrot.slane %v883, 4
    %v897 = vsel %vm253, %v896, %v895
    %898 = vrot.lane.b32.xlu0 %v897, 64
    %v899 = vpop.permute.xlu0 %898
    %v900 = vsel %vm133, %v899, 0
    %902 = vmatpush.msra.mxu0 0.0
    %903 = vmatpush.msra.mxu0 0.0
    %904 = vmatpush.msra.mxu0 0.0
    %905 = vmatpush.msra.mxu0 0.0
    %906 = vmatpush.msra.mxu0 0.0
    %907 = vmatpush.msra.mxu0 0.0
    %908 = vmatpush.msra.mxu0 0.0
    %909 = vmatpush.msra.mxu0 0.0
    %910 = vmatpush.msra.mxu0 0.0
    %911 = vmatpush.msra.mxu0 0.0
    %912 = vmatpush.msra.mxu0 0.0
    %913 = vmatpush.msra.mxu0 0.0
    %914 = vmatpush.msra.mxu0 %v74
    %915 = vmatpush.msra.mxu0 %v73
    %916 = vmatpush.msra.mxu0 %v72
    %917 = vmatpush.msra.mxu0 %v71
    %918 = vmatmul.f32.gmra.mxu0 %v900
    %v919 = vpop.f32.mrf.mxu0
    %v920 = vadd.f32 0.0, %v919
    %921 = vdwg.mxu0
    %v923 = vrot.slane %v920, 2
    %v924 = vrot.slane %v920, 3
    %v927 = vadd.f32 %v128, %v923
    %v928 = vadd.f32 %v131, %v924
    %v929 = vmul.f32 %v927, %v94
    %v930 = vmul.f32 %v928, %v94
    %v931 = vxor.u32 %v929, 2147483648
    %v932 = vxor.u32 %v930, 2147483648
    %v933 = vmul.f32 %v931, 1.442695
    %v934 = vpow.pop %v933
    %v935 = vmul.f32 %v932, 1.442695
    %v936 = vpow.pop %v935
    %v937 = vadd.f32 %v934, 1.0
    %v938 = vadd.f32 %v936, 1.0
    %v939 = vrcp.pop %v937
    %v940 = vmul.f32 %v937, %v939
    %v941 = vsub.f32 1.0, %v940
    %v942 = vmul.f32 %v939, %v941
    %v943 = vadd.f32 %v939, %v942
    %vm944 = vweird.f32 %v937
    %vm945 = vweird.f32 %v939
    %vm946 = vmor %vm944, %vm945
    %v947 = vsel %vm946, %v939, %v943
    %v948 = vand.u32 2147483647, %v937
    %vm949 = vcmp.eq.f32.partialorder %v948, 8.507059e+37
    %v950 = vand.u32 %v937, 2147483648
    %v951 = vor.u32 1.1754944e-38, %v950
    %v952 = vsel %vm949, %v951, %v947
    %v953 = vmul.f32 1.0, %v952
    %v954 = vrcp.pop %v938
    %v955 = vmul.f32 %v938, %v954
    %v956 = vsub.f32 1.0, %v955
    %v957 = vmul.f32 %v954, %v956
    %v958 = vadd.f32 %v954, %v957
    %vm959 = vweird.f32 %v938
    %vm960 = vweird.f32 %v954
    %vm961 = vmor %vm959, %vm960
    %v962 = vsel %vm961, %v954, %v958
    %v963 = vand.u32 2147483647, %v938
    %vm964 = vcmp.eq.f32.partialorder %v963, 8.507059e+37
    %v965 = vand.u32 %v938, 2147483648
    %v966 = vor.u32 1.1754944e-38, %v965
    %v967 = vsel %vm964, %v966, %v962
    %v968 = vmul.f32 1.0, %v967
    %v969 = vmul.f32 %v953, %v94
    %v970 = vmul.f32 %v968, %v94
    %v971 = vadd.f32 %v969, %v95
    %v972 = vadd.f32 %v970, %v95
    %v975 = vrot.slane %v870, 7
    %v976 = vrot.slane %v871, 7
    %v979 = vmul.f32 %v971, %v975
    %v980 = vmul.f32 %v972, %v976
    %983 = vrot.lane.b32.xlu0 %v971, 32
    %v984 = vpop.permute.xlu0 %983
    %985 = vrot.lane.b32.xlu0 %v972, 32
    %v986 = vpop.permute.xlu0 %985
    %v989 = vmul.f32 %v971, %v984
    %v990 = vmul.f32 %v972, %v986
    %993 = vrot.lane.b32.xlu0 %v989, 32
    %v994 = vpop.permute.xlu0 %993
    %995 = vrot.lane.b32.xlu0 %v990, 32
    %v996 = vpop.permute.xlu0 %995
    %v999 = vadd.f32 %v979, %v994
    %v1000 = vadd.f32 %v980, %v996
    %v1001 = vtanh.pop %v999
    %v1002 = vtanh.pop %v1000
    %1005 = vrot.lane.b32.xlu0 %v1001, 32
    %v1006 = vpop.permute.xlu0 %1005
    %1007 = vrot.lane.b32.xlu0 %v1002, 32
    %v1008 = vpop.permute.xlu0 %1007
    %v1011 = vmul.f32 %v971, %v1006
    %v1012 = vmul.f32 %v972, %v1008
    %1015 = vrot.lane.b32.xlu0 %v1011, 64
    %v1016 = vpop.permute.xlu0 %1015
    %1017 = vrot.lane.b32.xlu0 %v1012, 64
    %v1018 = vpop.permute.xlu0 %1017
    %vm1021 = vcmask 260102
    %1022 = vst.msk [vmem:[#allocation2] sm:$0x40] %vm1021, %v1016
    %1023 = vst.msk [vmem:[#allocation2 + $0x8] sm:$0x40] %vm1021, %v1018
    %v1024 = vrot.slane %v1011, 6
    %v1025 = vrot.slane %v1012, 5
    %v1026 = vsel %vm253, %v1025, %v1024
    %1027 = vrot.lane.b32.xlu0 %v1026, 64
    %v1028 = vpop.permute.xlu0 %1027
    %v1029 = vsel %vm133, %v1028, 0
    %1031 = vmatpush.msra.mxu0 0.0
    %1032 = vmatpush.msra.mxu0 0.0
    %1033 = vmatpush.msra.mxu0 0.0
    %1034 = vmatpush.msra.mxu0 0.0
    %1035 = vmatpush.msra.mxu0 0.0
    %1036 = vmatpush.msra.mxu0 0.0
    %1037 = vmatpush.msra.mxu0 0.0
    %1038 = vmatpush.msra.mxu0 0.0
    %1039 = vmatpush.msra.mxu0 0.0
    %1040 = vmatpush.msra.mxu0 0.0
    %1041 = vmatpush.msra.mxu0 0.0
    %1042 = vmatpush.msra.mxu0 0.0
    %1043 = vmatpush.msra.mxu0 %v74
    %1044 = vmatpush.msra.mxu0 %v73
    %1045 = vmatpush.msra.mxu0 %v72
    %1046 = vmatpush.msra.mxu0 %v71
    %1047 = vmatmul.f32.gmra.mxu0 %v1029
    %v1048 = vpop.f32.mrf.mxu0
    %v1049 = vadd.f32 0.0, %v1048
    %1050 = vdwg.mxu0
    %v1052 = vrot.slane %v1049, 1
    %v1053 = vrot.slane %v1049, 2
    %v1056 = vadd.f32 %v128, %v1052
    %v1057 = vadd.f32 %v131, %v1053
    %v1058 = vmul.f32 %v1056, %v94
    %v1059 = vmul.f32 %v1057, %v94
    %v1060 = vxor.u32 %v1058, 2147483648
    %v1061 = vxor.u32 %v1059, 2147483648
    %v1062 = vmul.f32 %v1060, 1.442695
    %v1063 = vpow.pop %v1062
    %v1064 = vmul.f32 %v1061, 1.442695
    %v1065 = vpow.pop %v1064
    %v1066 = vadd.f32 %v1063, 1.0
    %v1067 = vadd.f32 %v1065, 1.0
    %v1068 = vrcp.pop %v1066
    %v1069 = vmul.f32 %v1066, %v1068
    %v1070 = vsub.f32 1.0, %v1069
    %v1071 = vmul.f32 %v1068, %v1070
    %v1072 = vadd.f32 %v1068, %v1071
    %vm1073 = vweird.f32 %v1066
    %vm1074 = vweird.f32 %v1068
    %vm1075 = vmor %vm1073, %vm1074
    %v1076 = vsel %vm1075, %v1068, %v1072
    %v1077 = vand.u32 2147483647, %v1066
    %vm1078 = vcmp.eq.f32.partialorder %v1077, 8.507059e+37
    %v1079 = vand.u32 %v1066, 2147483648
    %v1080 = vor.u32 1.1754944e-38, %v1079
    %v1081 = vsel %vm1078, %v1080, %v1076
    %v1082 = vmul.f32 1.0, %v1081
    %v1083 = vrcp.pop %v1067
    %v1084 = vmul.f32 %v1067, %v1083
    %v1085 = vsub.f32 1.0, %v1084
    %v1086 = vmul.f32 %v1083, %v1085
    %v1087 = vadd.f32 %v1083, %v1086
    %vm1088 = vweird.f32 %v1067
    %vm1089 = vweird.f32 %v1083
    %vm1090 = vmor %vm1088, %vm1089
    %v1091 = vsel %vm1090, %v1083, %v1087
    %v1092 = vand.u32 2147483647, %v1067
    %vm1093 = vcmp.eq.f32.partialorder %v1092, 8.507059e+37
    %v1094 = vand.u32 %v1067, 2147483648
    %v1095 = vor.u32 1.1754944e-38, %v1094
    %v1096 = vsel %vm1093, %v1095, %v1091
    %v1097 = vmul.f32 1.0, %v1096
    %v1098 = vmul.f32 %v1082, %v94
    %v1099 = vmul.f32 %v1097, %v94
    %v1100 = vadd.f32 %v1098, %v95
    %v1101 = vadd.f32 %v1099, %v95
    %v1104 = vrot.slane %v999, 7
    %v1105 = vrot.slane %v1000, 7
    %v1108 = vmul.f32 %v1100, %v1104
    %v1109 = vmul.f32 %v1101, %v1105
    %1112 = vrot.lane.b32.xlu0 %v1100, 32
    %v1113 = vpop.permute.xlu0 %1112
    %1114 = vrot.lane.b32.xlu0 %v1101, 32
    %v1115 = vpop.permute.xlu0 %1114
    %v1118 = vmul.f32 %v1100, %v1113
    %v1119 = vmul.f32 %v1101, %v1115
    %1122 = vrot.lane.b32.xlu0 %v1118, 32
    %v1123 = vpop.permute.xlu0 %1122
    %1124 = vrot.lane.b32.xlu0 %v1119, 32
    %v1125 = vpop.permute.xlu0 %1124
    %v1128 = vadd.f32 %v1108, %v1123
    %v1129 = vadd.f32 %v1109, %v1125
    %v1130 = vtanh.pop %v1128
    %v1131 = vtanh.pop %v1129
    %1134 = vrot.lane.b32.xlu0 %v1130, 32
    %v1135 = vpop.permute.xlu0 %1134
    %1136 = vrot.lane.b32.xlu0 %v1131, 32
    %v1137 = vpop.permute.xlu0 %1136
    %v1140 = vmul.f32 %v1100, %v1135
    %v1141 = vmul.f32 %v1101, %v1137
    %1144 = vrot.lane.b32.xlu0 %v1140, 64
    %v1145 = vpop.permute.xlu0 %1144
    %1146 = vrot.lane.b32.xlu0 %v1141, 64
    %v1147 = vpop.permute.xlu0 %1146
    %vm1150 = vcmask 261127
    %1151 = vst.msk [vmem:[#allocation2] sm:$0x80] %vm1150, %v1145
    %1152 = vst.msk [vmem:[#allocation2 + $0x8] sm:$0x80] %vm1150, %v1147
    %v1153 = vld [vmem:[#allocation2] sm:$0xff]
    %v1154 = vld [vmem:[#allocation2 + $0x8] sm:$0xff]
    %v1156 = vperm.slane %v85, 0
    %v1158 = vperm.slane %v1140, 7
    %v1159 = vperm.slane %v1141, 7
    %1162 = vrot.lane.b32.xlu0 %v1153, 64
    %v1163 = vpop.permute.xlu0 %1162
    %1164 = vrot.lane.b32.xlu0 %v1154, 64
    %v1165 = vpop.permute.xlu0 %1164
    %v1168 = vmul.f32 %v1158, %v1163
    %v1169 = vmul.f32 %v1159, %v1165
    %1172 = vrot.lane.b32.xlu0 %v1168, 64
    %v1173 = vpop.permute.xlu0 %1172
    %1174 = vrot.lane.b32.xlu0 %v1169, 64
    %v1175 = vpop.permute.xlu0 %1174
    %v1178 = vsel %vm133, %v1173, 0.0
    %1179 = vadd.xlane.f32.xlu0 %v1178
    %v1180 = vpop.xlane.xlu0 %1179
    %v1181 = vsel %vm133, %v1175, 0.0
    %1182 = vadd.xlane.f32.xlu0 %v1181
    %v1183 = vpop.xlane.xlu0 %1182
    %v1186 = vperm.slane %v1180, %v92
    %v1187 = vperm.slane %v1183, %v92
    %v1188 = vsel %vm253, %v1187, %v1186
    %vm1190 = vcmask 58368
    %v1191 = vsel %vm1190, %v1188, -inf
    %1192 = vmax.xlane.f32.xlu0 %v1191
    %v1193 = vpop.xlane.xlu0 %1192
    %v1195 = vperm.slane %v1193, 0
    %v1196 = vperm.slane %v1193, 1
    %v1199 = vsub.f32 %v1180, %v1195
    %v1200 = vsub.f32 %v1183, %v1196
    %v1201 = vmul.f32 %v1199, 1.442695
    %v1202 = vpow.pop %v1201
    %v1203 = vmul.f32 %v1200, 1.442695
    %v1204 = vpow.pop %v1203
    %1207 = vset.pattern.permute.xlu0 0
    %1208 = vperm.xlu0 %1207, %v1202
    %v1209 = vpop.permute.xlu0 %1208
    %1210 = vset.pattern.permute.xlu0 0
    %1211 = vperm.xlu0 %1210, %v1204
    %v1212 = vpop.permute.xlu0 %1211
    %v1213 = vperm.slane %v1209, %v92
    %v1214 = vperm.slane %v1212, %v92
    %v1215 = vsel %vm253, %v1214, %v1213
    %v1217 = vsel %vm1190, %v1215, 0.0
    %1218 = vadd.xlane.f32.xlu0 %v1217
    %v1219 = vpop.xlane.xlu0 %1218
    %v1220 = vrcp.pop %v1219
    %v1222 = vperm.slane %v1220, 0
    %v1223 = vperm.slane %v1220, 1
    %v1226 = vmul.f32 %v1202, %v1222
    %v1227 = vmul.f32 %v1204, %v1223
    %1229 = vset.pattern.permute.xlu0 0
    %1230 = vperm.xlu0 %1229, %v1226
    %v1231 = vpop.permute.xlu0 %1230
    %1234 = vset.pattern.permute.xlu0 0
    %1235 = vperm.xlu0 %1234, %v1227
    %v1236 = vpop.permute.xlu0 %1235
    %v1238 = vmul.f32 %v1231, %v1153
    %v1239 = vmul.f32 %v1236, %v1154
    %v1240 = vsel %vm133, %v1238, 0.0
    %v1241 = vrot.slane %v1240, 4
    %v1242 = vadd.f32 %v1240, %v1241
    %v1243 = vrot.slane %v1242, 2
    %v1244 = vadd.f32 %v1242, %v1243
    %v1245 = vrot.slane %v1244, 1
    %v1246 = vadd.f32 %v1244, %v1245
    %v1247 = vsel %vm133, %v1239, 0.0
    %v1248 = vrot.slane %v1247, 4
    %v1249 = vadd.f32 %v1247, %v1248
    %v1250 = vrot.slane %v1249, 2
    %v1251 = vadd.f32 %v1249, %v1250
    %v1252 = vrot.slane %v1251, 1
    %v1253 = vadd.f32 %v1251, %v1252
    %v1256 = vsel %vm253, %v1253, %v1246
    %v1258 = vrot.slane %v1140, 7
    %v1259 = vrot.slane %v1141, 6
    %v1260 = vsel %vm253, %v1259, %v1258
    %1261 = vrot.lane.b32.xlu0 %v1260, 96
    %v1262 = vpop.permute.xlu0 %1261
    %v1264 = vsel %vm133, %v1256, %v1262
    %1265 = vset.pattern.permute.xlu0 0
    %1266 = vperm.xlu0 %1265, %v89
    %v1267 = vpop.permute.xlu0 %1266
    %1269 = vset.pattern.permute.xlu0 0
    %1270 = vperm.xlu0 %1269, %v90
    %v1271 = vpop.permute.xlu0 %1270
    %v1274 = vperm.slane %v76, 0
    %v1276 = vmul.f32 %v1267, %v1274
    %v1277 = vmul.f32 %v1271, %v1274
    %v1280 = vrot.slane %v1276, 7
    %v1281 = vrot.slane %v1277, 6
    %v1282 = vsel %vm253, %v1281, %v1280
    %v1284 = vadd.f32 %v1156, %v1282
    %vm1285 = vcmask 523264
    %v1287 = vsel %vm1285, %v1264, 0
    %1289 = vmatpush.msra.mxu0 0.0
    %1290 = vmatpush.msra.mxu0 0.0
    %1291 = vmatpush.msra.mxu0 0.0
    %1292 = vmatpush.msra.mxu0 0.0
    %1293 = vmatpush.msra.mxu0 0.0
    %1294 = vmatpush.msra.mxu0 0.0
    %1295 = vmatpush.msra.mxu0 0.0
    %1296 = vmatpush.msra.mxu0 0.0
    %1297 = vmatpush.msra.mxu0 %v84
    %1298 = vmatpush.msra.mxu0 %v83
    %1299 = vmatpush.msra.mxu0 %v82
    %1300 = vmatpush.msra.mxu0 %v81
    %1301 = vmatpush.msra.mxu0 %v80
    %1302 = vmatpush.msra.mxu0 %v79
    %1303 = vmatpush.msra.mxu0 %v78
    %1304 = vmatpush.msra.mxu0 %v77
    %1305 = vmatmul.f32.gmra.mxu0 %v1287
    %v1306 = vpop.f32.mrf.mxu0
    %v1307 = vadd.f32 0.0, %v1306
    %1308 = vdwg.mxu0
    %v1309 = vadd.f32 %v1284, %v1307
    %v1310 = vmul.f32 %v1309, %v94
    %v1311 = vxor.u32 %v1310, 2147483648
    %v1312 = vmul.f32 %v1311, 1.442695
    %v1313 = vpow.pop %v1312
    %v1314 = vadd.f32 %v1313, 1.0
    %v1315 = vrcp.pop %v1314
    %v1316 = vmul.f32 %v1314, %v1315
    %v1317 = vsub.f32 1.0, %v1316
    %v1318 = vmul.f32 %v1315, %v1317
    %v1319 = vadd.f32 %v1315, %v1318
    %vm1320 = vweird.f32 %v1314
    %vm1321 = vweird.f32 %v1315
    %vm1322 = vmor %vm1320, %vm1321
    %v1323 = vsel %vm1322, %v1315, %v1319
    %v1324 = vand.u32 2147483647, %v1314
    %vm1325 = vcmp.eq.f32.partialorder %v1324, 8.507059e+37
    %v1326 = vand.u32 %v1314, 2147483648
    %v1327 = vor.u32 1.1754944e-38, %v1326
    %v1328 = vsel %vm1325, %v1327, %v1323
    %v1329 = vmul.f32 1.0, %v1328
    %v1330 = vmul.f32 %v1329, %v94
    %v1331 = vadd.f32 %v1330, %v95
    %v1334 = vrot.slane %v1128, 7
    %v1335 = vrot.slane %v1129, 6
    %v1336 = vsel %vm253, %v1335, %v1334
    %v1338 = vmul.f32 %v1331, %v1336
    %1340 = vrot.lane.b32.xlu0 %v1331, 32
    %v1341 = vpop.permute.xlu0 %1340
    %v1343 = vmul.f32 %v1331, %v1341
    %1345 = vrot.lane.b32.xlu0 %v1343, 32
    %v1346 = vpop.permute.xlu0 %1345
    %v1348 = vadd.f32 %v1338, %v1346
    %v1349 = vtanh.pop %v1348
    %1351 = vrot.lane.b32.xlu0 %v1349, 32
    %v1352 = vpop.permute.xlu0 %1351
    %v1354 = vmul.f32 %v1331, %v1352
    %v1356 = vperm.slane %v86, 0
    %1357 = vrot.lane.b32.xlu0 %v1356, 64
    %v1358 = vpop.permute.xlu0 %1357
    %v1360 = vmul.f32 %v1354, %v1358
    %v1362 = vperm.slane %v87, 0
    %v1364 = vmul.f32 %v1246, %v1362
    %v1365 = vmul.f32 %v1253, %v1362
    %v1368 = vrot.slane %v1365, 7
    %v1369 = vsel %vm253, %v1368, %v1364
    %1370 = vrot.lane.b32.xlu0 %v1369, 64
    %v1371 = vpop.permute.xlu0 %1370
    %v1373 = vadd.f32 %v1360, %v1371
    %1375 = vrot.lane.b32.xlu0 %v1373, 64
    %v1376 = vpop.permute.xlu0 %1375
    %vm1378 = vcmask 254976
    %v1379 = vsel %vm1378, %v1376, 0.0
    %1380 = vadd.xlane.f32.xlu0 %v1379
    %v1381 = vpop.xlane.xlu0 %1380
    %v1383 = vperm.slane %v88, 0
    %v1385 = vadd.f32 %v1381, %v1383
    %v1387 = vrot.slane %v1354, 1
    %v1388 = vperm.slane %v1354, 0
    %v1389 = vperm.slane %v1387, 0
    %v1392 = vmul.f32 %v1388, %v1163
    %v1393 = vmul.f32 %v1389, %v1165
    %1396 = vrot.lane.b32.xlu0 %v1392, 64
    %v1397 = vpop.permute.xlu0 %1396
    %1398 = vrot.lane.b32.xlu0 %v1393, 64
    %v1399 = vpop.permute.xlu0 %1398
    %v1402 = vsel %vm133, %v1397, 0.0
    %1403 = vadd.xlane.f32.xlu0 %v1402
    %v1404 = vpop.xlane.xlu0 %1403
    %v1405 = vsel %vm133, %v1399, 0.0
    %1406 = vadd.xlane.f32.xlu0 %v1405
    %v1407 = vpop.xlane.xlu0 %1406
    %v1410 = vperm.slane %v1404, %v92
    %v1411 = vperm.slane %v1407, %v92
    %v1412 = vsel %vm253, %v1411, %v1410
    %v1414 = vsel %vm1190, %v1412, -inf
    %1415 = vmax.xlane.f32.xlu0 %v1414
    %v1416 = vpop.xlane.xlu0 %1415
    %v1418 = vperm.slane %v1416, 0
    %v1419 = vperm.slane %v1416, 1
    %v1422 = vsub.f32 %v1404, %v1418
    %v1423 = vsub.f32 %v1407, %v1419
    %v1424 = vmul.f32 %v1422, 1.442695
    %v1425 = vpow.pop %v1424
    %v1426 = vmul.f32 %v1423, 1.442695
    %v1427 = vpow.pop %v1426
    %1430 = vset.pattern.permute.xlu0 0
    %1431 = vperm.xlu0 %1430, %v1425
    %v1432 = vpop.permute.xlu0 %1431
    %1433 = vset.pattern.permute.xlu0 0
    %1434 = vperm.xlu0 %1433, %v1427
    %v1435 = vpop.permute.xlu0 %1434
    %v1436 = vperm.slane %v1432, %v92
    %v1437 = vperm.slane %v1435, %v92
    %v1438 = vsel %vm253, %v1437, %v1436
    %v1440 = vsel %vm1190, %v1438, 0.0
    %1441 = vadd.xlane.f32.xlu0 %v1440
    %v1442 = vpop.xlane.xlu0 %1441
    %v1443 = vrcp.pop %v1442
    %v1445 = vperm.slane %v1443, 0
    %v1446 = vperm.slane %v1443, 1
    %v1449 = vmul.f32 %v1425, %v1445
    %v1450 = vmul.f32 %v1427, %v1446
    %1452 = vset.pattern.permute.xlu0 0
    %1453 = vperm.xlu0 %1452, %v1449
    %v1454 = vpop.permute.xlu0 %1453
    %1457 = vset.pattern.permute.xlu0 0
    %1458 = vperm.xlu0 %1457, %v1450
    %v1459 = vpop.permute.xlu0 %1458
    %v1461 = vmul.f32 %v1454, %v1153
    %v1462 = vmul.f32 %v1459, %v1154
    %v1463 = vsel %vm133, %v1461, 0.0
    %v1464 = vrot.slane %v1463, 4
    %v1465 = vadd.f32 %v1463, %v1464
    %v1466 = vrot.slane %v1465, 2
    %v1467 = vadd.f32 %v1465, %v1466
    %v1468 = vrot.slane %v1467, 1
    %v1469 = vadd.f32 %v1467, %v1468
    %v1470 = vsel %vm133, %v1462, 0.0
    %v1471 = vrot.slane %v1470, 4
    %v1472 = vadd.f32 %v1470, %v1471
    %v1473 = vrot.slane %v1472, 2
    %v1474 = vadd.f32 %v1472, %v1473
    %v1475 = vrot.slane %v1474, 1
    %v1476 = vadd.f32 %v1474, %v1475
    %v1479 = vsel %vm253, %v1476, %v1469
    %1481 = vrot.lane.b32.xlu0 %v1354, 96
    %v1482 = vpop.permute.xlu0 %1481
    %v1484 = vsel %vm133, %v1479, %v1482
    %1486 = vset.pattern.permute.xlu0 0
    %1487 = vperm.xlu0 %1486, %v1385
    %v1488 = vpop.permute.xlu0 %1487
    %v1490 = vmul.f32 %v1488, %v1274
    %v1491 = vadd.f32 %v1156, %v1490
    %v1493 = vsel %vm1285, %v1484, 0
    %1495 = vmatpush.msra.mxu0 0.0
    %1496 = vmatpush.msra.mxu0 0.0
    %1497 = vmatpush.msra.mxu0 0.0
    %1498 = vmatpush.msra.mxu0 0.0
    %1499 = vmatpush.msra.mxu0 0.0
    %1500 = vmatpush.msra.mxu0 0.0
    %1501 = vmatpush.msra.mxu0 0.0
    %1502 = vmatpush.msra.mxu0 0.0
    %1503 = vmatpush.msra.mxu0 %v84
    %1504 = vmatpush.msra.mxu0 %v83
    %1505 = vmatpush.msra.mxu0 %v82
    %1506 = vmatpush.msra.mxu0 %v81
    %1507 = vmatpush.msra.mxu0 %v80
    %1508 = vmatpush.msra.mxu0 %v79
    %1509 = vmatpush.msra.mxu0 %v78
    %1510 = vmatpush.msra.mxu0 %v77
    %1511 = vmatmul.f32.gmra.mxu0 %v1493
    %v1512 = vpop.f32.mrf.mxu0
    %v1513 = vadd.f32 0.0, %v1512
    %1514 = vdwg.mxu0
    %v1515 = vadd.f32 %v1491, %v1513
    %v1516 = vmul.f32 %v1515, %v94
    %v1517 = vxor.u32 %v1516, 2147483648
    %v1518 = vmul.f32 %v1517, 1.442695
    %v1519 = vpow.pop %v1518
    %v1520 = vadd.f32 %v1519, 1.0
    %v1521 = vrcp.pop %v1520
    %v1522 = vmul.f32 %v1520, %v1521
    %v1523 = vsub.f32 1.0, %v1522
    %v1524 = vmul.f32 %v1521, %v1523
    %v1525 = vadd.f32 %v1521, %v1524
    %vm1526 = vweird.f32 %v1520
    %vm1527 = vweird.f32 %v1521
    %vm1528 = vmor %vm1526, %vm1527
    %v1529 = vsel %vm1528, %v1521, %v1525
    %v1530 = vand.u32 2147483647, %v1520
    %vm1531 = vcmp.eq.f32.partialorder %v1530, 8.507059e+37
    %v1532 = vand.u32 %v1520, 2147483648
    %v1533 = vor.u32 1.1754944e-38, %v1532
    %v1534 = vsel %vm1531, %v1533, %v1529
    %v1535 = vmul.f32 1.0, %v1534
    %v1536 = vmul.f32 %v1535, %v94
    %v1537 = vadd.f32 %v1536, %v95
    %v1538 = vmul.f32 %v1537, %v1348
    %1540 = vrot.lane.b32.xlu0 %v1537, 32
    %v1541 = vpop.permute.xlu0 %1540
    %v1543 = vmul.f32 %v1537, %v1541
    %1545 = vrot.lane.b32.xlu0 %v1543, 32
    %v1546 = vpop.permute.xlu0 %1545
    %v1548 = vadd.f32 %v1538, %v1546
    %v1549 = vtanh.pop %v1548
    %1551 = vrot.lane.b32.xlu0 %v1549, 32
    %v1552 = vpop.permute.xlu0 %1551
    %v1554 = vmul.f32 %v1537, %v1552
    %v1555 = vmul.f32 %v1554, %v1358
    %v1556 = vmul.f32 %v1469, %v1362
    %v1557 = vmul.f32 %v1476, %v1362
    %v1560 = vrot.slane %v1557, 7
    %v1561 = vsel %vm253, %v1560, %v1556
    %1562 = vrot.lane.b32.xlu0 %v1561, 64
    %v1563 = vpop.permute.xlu0 %1562
    %v1565 = vadd.f32 %v1555, %v1563
    %1567 = vrot.lane.b32.xlu0 %v1565, 64
    %v1568 = vpop.permute.xlu0 %1567
    %v1570 = vsel %vm1378, %v1568, 0.0
    %1571 = vadd.xlane.f32.xlu0 %v1570
    %v1572 = vpop.xlane.xlu0 %1571
    %v1573 = vadd.f32 %v1572, %v1383
    %v1575 = vrot.slane %v1554, 1
    %v1576 = vperm.slane %v1554, 0
    %v1577 = vperm.slane %v1575, 0
    %v1580 = vmul.f32 %v1576, %v1163
    %v1581 = vmul.f32 %v1577, %v1165
    %1584 = vrot.lane.b32.xlu0 %v1580, 64
    %v1585 = vpop.permute.xlu0 %1584
    %1586 = vrot.lane.b32.xlu0 %v1581, 64
    %v1587 = vpop.permute.xlu0 %1586
    %v1590 = vsel %vm133, %v1585, 0.0
    %1591 = vadd.xlane.f32.xlu0 %v1590
    %v1592 = vpop.xlane.xlu0 %1591
    %v1593 = vsel %vm133, %v1587, 0.0
    %1594 = vadd.xlane.f32.xlu0 %v1593
    %v1595 = vpop.xlane.xlu0 %1594
    %v1598 = vperm.slane %v1592, %v92
    %v1599 = vperm.slane %v1595, %v92
    %v1600 = vsel %vm253, %v1599, %v1598
    %v1602 = vsel %vm1190, %v1600, -inf
    %1603 = vmax.xlane.f32.xlu0 %v1602
    %v1604 = vpop.xlane.xlu0 %1603
    %v1606 = vperm.slane %v1604, 0
    %v1607 = vperm.slane %v1604, 1
    %v1610 = vsub.f32 %v1592, %v1606
    %v1611 = vsub.f32 %v1595, %v1607
    %v1612 = vmul.f32 %v1610, 1.442695
    %v1613 = vpow.pop %v1612
    %v1614 = vmul.f32 %v1611, 1.442695
    %v1615 = vpow.pop %v1614
    %1618 = vset.pattern.permute.xlu0 0
    %1619 = vperm.xlu0 %1618, %v1613
    %v1620 = vpop.permute.xlu0 %1619
    %1621 = vset.pattern.permute.xlu0 0
    %1622 = vperm.xlu0 %1621, %v1615
    %v1623 = vpop.permute.xlu0 %1622
    %v1624 = vperm.slane %v1620, %v92
    %v1625 = vperm.slane %v1623, %v92
    %v1626 = vsel %vm253, %v1625, %v1624
    %v1628 = vsel %vm1190, %v1626, 0.0
    %1629 = vadd.xlane.f32.xlu0 %v1628
    %v1630 = vpop.xlane.xlu0 %1629
    %v1631 = vrcp.pop %v1630
    %v1633 = vperm.slane %v1631, 0
    %v1634 = vperm.slane %v1631, 1
    %v1637 = vmul.f32 %v1613, %v1633
    %v1638 = vmul.f32 %v1615, %v1634
    %1640 = vset.pattern.permute.xlu0 0
    %1641 = vperm.xlu0 %1640, %v1637
    %v1642 = vpop.permute.xlu0 %1641
    %1645 = vset.pattern.permute.xlu0 0
    %1646 = vperm.xlu0 %1645, %v1638
    %v1647 = vpop.permute.xlu0 %1646
    %v1649 = vmul.f32 %v1642, %v1153
    %v1650 = vmul.f32 %v1647, %v1154
    %v1651 = vsel %vm133, %v1649, 0.0
    %v1652 = vrot.slane %v1651, 4
    %v1653 = vadd.f32 %v1651, %v1652
    %v1654 = vrot.slane %v1653, 2
    %v1655 = vadd.f32 %v1653, %v1654
    %v1656 = vrot.slane %v1655, 1
    %v1657 = vadd.f32 %v1655, %v1656
    %v1658 = vsel %vm133, %v1650, 0.0
    %v1659 = vrot.slane %v1658, 4
    %v1660 = vadd.f32 %v1658, %v1659
    %v1661 = vrot.slane %v1660, 2
    %v1662 = vadd.f32 %v1660, %v1661
    %v1663 = vrot.slane %v1662, 1
    %v1664 = vadd.f32 %v1662, %v1663
    %v1667 = vsel %vm253, %v1664, %v1657
    %1669 = vrot.lane.b32.xlu0 %v1554, 96
    %v1670 = vpop.permute.xlu0 %1669
    %v1672 = vsel %vm133, %v1667, %v1670
    %1674 = vset.pattern.permute.xlu0 0
    %1675 = vperm.xlu0 %1674, %v1573
    %v1676 = vpop.permute.xlu0 %1675
    %v1678 = vmul.f32 %v1676, %v1274
    %v1679 = vadd.f32 %v1156, %v1678
    %v1681 = vsel %vm1285, %v1672, 0
    %1683 = vmatpush.msra.mxu0 0.0
    %1684 = vmatpush.msra.mxu0 0.0
    %1685 = vmatpush.msra.mxu0 0.0
    %1686 = vmatpush.msra.mxu0 0.0
    %1687 = vmatpush.msra.mxu0 0.0
    %1688 = vmatpush.msra.mxu0 0.0
    %1689 = vmatpush.msra.mxu0 0.0
    %1690 = vmatpush.msra.mxu0 0.0
    %1691 = vmatpush.msra.mxu0 %v84
    %1692 = vmatpush.msra.mxu0 %v83
    %1693 = vmatpush.msra.mxu0 %v82
    %1694 = vmatpush.msra.mxu0 %v81
    %1695 = vmatpush.msra.mxu0 %v80
    %1696 = vmatpush.msra.mxu0 %v79
    %1697 = vmatpush.msra.mxu0 %v78
    %1698 = vmatpush.msra.mxu0 %v77
    %1699 = vmatmul.f32.gmra.mxu0 %v1681
    %v1700 = vpop.f32.mrf.mxu0
    %v1701 = vadd.f32 0.0, %v1700
    %1702 = vdwg.mxu0
    %v1703 = vadd.f32 %v1679, %v1701
    %v1704 = vmul.f32 %v1703, %v94
    %v1705 = vxor.u32 %v1704, 2147483648
    %v1706 = vmul.f32 %v1705, 1.442695
    %v1707 = vpow.pop %v1706
    %v1708 = vadd.f32 %v1707, 1.0
    %v1709 = vrcp.pop %v1708
    %v1710 = vmul.f32 %v1708, %v1709
    %v1711 = vsub.f32 1.0, %v1710
    %v1712 = vmul.f32 %v1709, %v1711
    %v1713 = vadd.f32 %v1709, %v1712
    %vm1714 = vweird.f32 %v1708
    %vm1715 = vweird.f32 %v1709
    %vm1716 = vmor %vm1714, %vm1715
    %v1717 = vsel %vm1716, %v1709, %v1713
    %v1718 = vand.u32 2147483647, %v1708
    %vm1719 = vcmp.eq.f32.partialorder %v1718, 8.507059e+37
    %v1720 = vand.u32 %v1708, 2147483648
    %v1721 = vor.u32 1.1754944e-38, %v1720
    %v1722 = vsel %vm1719, %v1721, %v1717
    %v1723 = vmul.f32 1.0, %v1722
    %v1724 = vmul.f32 %v1723, %v94
    %v1725 = vadd.f32 %v1724, %v95
    %v1726 = vmul.f32 %v1725, %v1548
    %1728 = vrot.lane.b32.xlu0 %v1725, 32
    %v1729 = vpop.permute.xlu0 %1728
    %v1731 = vmul.f32 %v1725, %v1729
    %1733 = vrot.lane.b32.xlu0 %v1731, 32
    %v1734 = vpop.permute.xlu0 %1733
    %v1736 = vadd.f32 %v1726, %v1734
    %v1737 = vtanh.pop %v1736
    %1739 = vrot.lane.b32.xlu0 %v1737, 32
    %v1740 = vpop.permute.xlu0 %1739
    %v1742 = vmul.f32 %v1725, %v1740
    %v1743 = vmul.f32 %v1742, %v1358
    %v1744 = vmul.f32 %v1657, %v1362
    %v1745 = vmul.f32 %v1664, %v1362
    %v1748 = vrot.slane %v1745, 7
    %v1749 = vsel %vm253, %v1748, %v1744
    %1750 = vrot.lane.b32.xlu0 %v1749, 64
    %v1751 = vpop.permute.xlu0 %1750
    %v1753 = vadd.f32 %v1743, %v1751
    %1755 = vrot.lane.b32.xlu0 %v1753, 64
    %v1756 = vpop.permute.xlu0 %1755
    %v1758 = vsel %vm1378, %v1756, 0.0
    %1759 = vadd.xlane.f32.xlu0 %v1758
    %v1760 = vpop.xlane.xlu0 %1759
    %v1761 = vadd.f32 %v1760, %v1383
    %v1763 = vrot.slane %v1742, 1
    %v1764 = vperm.slane %v1742, 0
    %v1765 = vperm.slane %v1763, 0
    %v1768 = vmul.f32 %v1764, %v1163
    %v1769 = vmul.f32 %v1765, %v1165
    %1772 = vrot.lane.b32.xlu0 %v1768, 64
    %v1773 = vpop.permute.xlu0 %1772
    %1774 = vrot.lane.b32.xlu0 %v1769, 64
    %v1775 = vpop.permute.xlu0 %1774
    %v1778 = vsel %vm133, %v1773, 0.0
    %1779 = vadd.xlane.f32.xlu0 %v1778
    %v1780 = vpop.xlane.xlu0 %1779
    %v1781 = vsel %vm133, %v1775, 0.0
    %1782 = vadd.xlane.f32.xlu0 %v1781
    %v1783 = vpop.xlane.xlu0 %1782
    %v1786 = vperm.slane %v1780, %v92
    %v1787 = vperm.slane %v1783, %v92
    %v1788 = vsel %vm253, %v1787, %v1786
    %v1790 = vsel %vm1190, %v1788, -inf
    %1791 = vmax.xlane.f32.xlu0 %v1790
    %v1792 = vpop.xlane.xlu0 %1791
    %v1794 = vperm.slane %v1792, 0
    %v1795 = vperm.slane %v1792, 1
    %v1798 = vsub.f32 %v1780, %v1794
    %v1799 = vsub.f32 %v1783, %v1795
    %v1800 = vmul.f32 %v1798, 1.442695
    %v1801 = vpow.pop %v1800
    %v1802 = vmul.f32 %v1799, 1.442695
    %v1803 = vpow.pop %v1802
    %1806 = vset.pattern.permute.xlu0 0
    %1807 = vperm.xlu0 %1806, %v1801
    %v1808 = vpop.permute.xlu0 %1807
    %1809 = vset.pattern.permute.xlu0 0
    %1810 = vperm.xlu0 %1809, %v1803
    %v1811 = vpop.permute.xlu0 %1810
    %v1812 = vperm.slane %v1808, %v92
    %v1813 = vperm.slane %v1811, %v92
    %v1814 = vsel %vm253, %v1813, %v1812
    %v1816 = vsel %vm1190, %v1814, 0.0
    %1817 = vadd.xlane.f32.xlu0 %v1816
    %v1818 = vpop.xlane.xlu0 %1817
    %v1819 = vrcp.pop %v1818
    %v1821 = vperm.slane %v1819, 0
    %v1822 = vperm.slane %v1819, 1
    %v1825 = vmul.f32 %v1801, %v1821
    %v1826 = vmul.f32 %v1803, %v1822
    %1828 = vset.pattern.permute.xlu0 0
    %1829 = vperm.xlu0 %1828, %v1825
    %v1830 = vpop.permute.xlu0 %1829
    %1833 = vset.pattern.permute.xlu0 0
    %1834 = vperm.xlu0 %1833, %v1826
    %v1835 = vpop.permute.xlu0 %1834
    %v1837 = vmul.f32 %v1830, %v1153
    %v1838 = vmul.f32 %v1835, %v1154
    %v1839 = vsel %vm133, %v1837, 0.0
    %v1840 = vrot.slane %v1839, 4
    %v1841 = vadd.f32 %v1839, %v1840
    %v1842 = vrot.slane %v1841, 2
    %v1843 = vadd.f32 %v1841, %v1842
    %v1844 = vrot.slane %v1843, 1
    %v1845 = vadd.f32 %v1843, %v1844
    %v1846 = vsel %vm133, %v1838, 0.0
    %v1847 = vrot.slane %v1846, 4
    %v1848 = vadd.f32 %v1846, %v1847
    %v1849 = vrot.slane %v1848, 2
    %v1850 = vadd.f32 %v1848, %v1849
    %v1851 = vrot.slane %v1850, 1
    %v1852 = vadd.f32 %v1850, %v1851
    %v1855 = vsel %vm253, %v1852, %v1845
    %1857 = vrot.lane.b32.xlu0 %v1742, 96
    %v1858 = vpop.permute.xlu0 %1857
    %v1860 = vsel %vm133, %v1855, %v1858
    %1862 = vset.pattern.permute.xlu0 0
    %1863 = vperm.xlu0 %1862, %v1761
    %v1864 = vpop.permute.xlu0 %1863
    %v1866 = vmul.f32 %v1864, %v1274
    %v1867 = vadd.f32 %v1156, %v1866
    %v1869 = vsel %vm1285, %v1860, 0
    %1871 = vmatpush.msra.mxu0 0.0
    %1872 = vmatpush.msra.mxu0 0.0
    %1873 = vmatpush.msra.mxu0 0.0
    %1874 = vmatpush.msra.mxu0 0.0
    %1875 = vmatpush.msra.mxu0 0.0
    %1876 = vmatpush.msra.mxu0 0.0
    %1877 = vmatpush.msra.mxu0 0.0
    %1878 = vmatpush.msra.mxu0 0.0
    %1879 = vmatpush.msra.mxu0 %v84
    %1880 = vmatpush.msra.mxu0 %v83
    %1881 = vmatpush.msra.mxu0 %v82
    %1882 = vmatpush.msra.mxu0 %v81
    %1883 = vmatpush.msra.mxu0 %v80
    %1884 = vmatpush.msra.mxu0 %v79
    %1885 = vmatpush.msra.mxu0 %v78
    %1886 = vmatpush.msra.mxu0 %v77
    %1887 = vmatmul.f32.gmra.mxu0 %v1869
    %v1888 = vpop.f32.mrf.mxu0
    %v1889 = vadd.f32 0.0, %v1888
    %1890 = vdwg.mxu0
    %v1891 = vadd.f32 %v1867, %v1889
    %v1892 = vmul.f32 %v1891, %v94
    %v1893 = vxor.u32 %v1892, 2147483648
    %v1894 = vmul.f32 %v1893, 1.442695
    %v1895 = vpow.pop %v1894
    %v1896 = vadd.f32 %v1895, 1.0
    %v1897 = vrcp.pop %v1896
    %v1898 = vmul.f32 %v1896, %v1897
    %v1899 = vsub.f32 1.0, %v1898
    %v1900 = vmul.f32 %v1897, %v1899
    %v1901 = vadd.f32 %v1897, %v1900
    %vm1902 = vweird.f32 %v1896
    %vm1903 = vweird.f32 %v1897
    %vm1904 = vmor %vm1902, %vm1903
    %v1905 = vsel %vm1904, %v1897, %v1901
    %v1906 = vand.u32 2147483647, %v1896
    %vm1907 = vcmp.eq.f32.partialorder %v1906, 8.507059e+37
    %v1908 = vand.u32 %v1896, 2147483648
    %v1909 = vor.u32 1.1754944e-38, %v1908
    %v1910 = vsel %vm1907, %v1909, %v1905
    %v1911 = vmul.f32 1.0, %v1910
    %v1912 = vmul.f32 %v1911, %v94
    %v1913 = vadd.f32 %v1912, %v95
    %v1914 = vmul.f32 %v1913, %v1736
    %1916 = vrot.lane.b32.xlu0 %v1913, 32
    %v1917 = vpop.permute.xlu0 %1916
    %v1919 = vmul.f32 %v1913, %v1917
    %1921 = vrot.lane.b32.xlu0 %v1919, 32
    %v1922 = vpop.permute.xlu0 %1921
    %v1924 = vadd.f32 %v1914, %v1922
    %v1925 = vtanh.pop %v1924
    %1927 = vrot.lane.b32.xlu0 %v1925, 32
    %v1928 = vpop.permute.xlu0 %1927
    %v1930 = vmul.f32 %v1913, %v1928
    %v1931 = vmul.f32 %v1930, %v1358
    %v1932 = vmul.f32 %v1845, %v1362
    %v1933 = vmul.f32 %v1852, %v1362
    %v1936 = vrot.slane %v1933, 7
    %v1937 = vsel %vm253, %v1936, %v1932
    %1938 = vrot.lane.b32.xlu0 %v1937, 64
    %v1939 = vpop.permute.xlu0 %1938
    %v1941 = vadd.f32 %v1931, %v1939
    %1943 = vrot.lane.b32.xlu0 %v1941, 64
    %v1944 = vpop.permute.xlu0 %1943
    %v1946 = vsel %vm1378, %v1944, 0.0
    %1947 = vadd.xlane.f32.xlu0 %v1946
    %v1948 = vpop.xlane.xlu0 %1947
    %v1949 = vadd.f32 %v1948, %v1383
    %v1951 = vrot.slane %v1930, 1
    %v1952 = vperm.slane %v1930, 0
    %v1953 = vperm.slane %v1951, 0
    %v1956 = vmul.f32 %v1952, %v1163
    %v1957 = vmul.f32 %v1953, %v1165
    %1960 = vrot.lane.b32.xlu0 %v1956, 64
    %v1961 = vpop.permute.xlu0 %1960
    %1962 = vrot.lane.b32.xlu0 %v1957, 64
    %v1963 = vpop.permute.xlu0 %1962
    %v1966 = vsel %vm133, %v1961, 0.0
    %1967 = vadd.xlane.f32.xlu0 %v1966
    %v1968 = vpop.xlane.xlu0 %1967
    %v1969 = vsel %vm133, %v1963, 0.0
    %1970 = vadd.xlane.f32.xlu0 %v1969
    %v1971 = vpop.xlane.xlu0 %1970
    %v1974 = vperm.slane %v1968, %v92
    %v1975 = vperm.slane %v1971, %v92
    %v1976 = vsel %vm253, %v1975, %v1974
    %v1978 = vsel %vm1190, %v1976, -inf
    %1979 = vmax.xlane.f32.xlu0 %v1978
    %v1980 = vpop.xlane.xlu0 %1979
    %v1982 = vperm.slane %v1980, 0
    %v1983 = vperm.slane %v1980, 1
    %v1986 = vsub.f32 %v1968, %v1982
    %v1987 = vsub.f32 %v1971, %v1983
    %v1988 = vmul.f32 %v1986, 1.442695
    %v1989 = vpow.pop %v1988
    %v1990 = vmul.f32 %v1987, 1.442695
    %v1991 = vpow.pop %v1990
    %1994 = vset.pattern.permute.xlu0 0
    %1995 = vperm.xlu0 %1994, %v1989
    %v1996 = vpop.permute.xlu0 %1995
    %1997 = vset.pattern.permute.xlu0 0
    %1998 = vperm.xlu0 %1997, %v1991
    %v1999 = vpop.permute.xlu0 %1998
    %v2000 = vperm.slane %v1996, %v92
    %v2001 = vperm.slane %v1999, %v92
    %v2002 = vsel %vm253, %v2001, %v2000
    %v2004 = vsel %vm1190, %v2002, 0.0
    %2005 = vadd.xlane.f32.xlu0 %v2004
    %v2006 = vpop.xlane.xlu0 %2005
    %v2007 = vrcp.pop %v2006
    %v2009 = vperm.slane %v2007, 0
    %v2010 = vperm.slane %v2007, 1
    %v2013 = vmul.f32 %v1989, %v2009
    %v2014 = vmul.f32 %v1991, %v2010
    %2016 = vset.pattern.permute.xlu0 0
    %2017 = vperm.xlu0 %2016, %v2013
    %v2018 = vpop.permute.xlu0 %2017
    %2021 = vset.pattern.permute.xlu0 0
    %2022 = vperm.xlu0 %2021, %v2014
    %v2023 = vpop.permute.xlu0 %2022
    %v2025 = vmul.f32 %v2018, %v1153
    %v2026 = vmul.f32 %v2023, %v1154
    %v2027 = vsel %vm133, %v2025, 0.0
    %v2028 = vrot.slane %v2027, 4
    %v2029 = vadd.f32 %v2027, %v2028
    %v2030 = vrot.slane %v2029, 2
    %v2031 = vadd.f32 %v2029, %v2030
    %v2032 = vrot.slane %v2031, 1
    %v2033 = vadd.f32 %v2031, %v2032
    %v2034 = vsel %vm133, %v2026, 0.0
    %v2035 = vrot.slane %v2034, 4
    %v2036 = vadd.f32 %v2034, %v2035
    %v2037 = vrot.slane %v2036, 2
    %v2038 = vadd.f32 %v2036, %v2037
    %v2039 = vrot.slane %v2038, 1
    %v2040 = vadd.f32 %v2038, %v2039
    %v2043 = vsel %vm253, %v2040, %v2033
    %2045 = vrot.lane.b32.xlu0 %v1930, 96
    %v2046 = vpop.permute.xlu0 %2045
    %v2048 = vsel %vm133, %v2043, %v2046
    %2050 = vset.pattern.permute.xlu0 0
    %2051 = vperm.xlu0 %2050, %v1949
    %v2052 = vpop.permute.xlu0 %2051
    %v2054 = vmul.f32 %v2052, %v1274
    %v2055 = vadd.f32 %v1156, %v2054
    %v2057 = vsel %vm1285, %v2048, 0
    %2059 = vmatpush.msra.mxu0 0.0
    %2060 = vmatpush.msra.mxu0 0.0
    %2061 = vmatpush.msra.mxu0 0.0
    %2062 = vmatpush.msra.mxu0 0.0
    %2063 = vmatpush.msra.mxu0 0.0
    %2064 = vmatpush.msra.mxu0 0.0
    %2065 = vmatpush.msra.mxu0 0.0
    %2066 = vmatpush.msra.mxu0 0.0
    %2067 = vmatpush.msra.mxu0 %v84
    %2068 = vmatpush.msra.mxu0 %v83
    %2069 = vmatpush.msra.mxu0 %v82
    %2070 = vmatpush.msra.mxu0 %v81
    %2071 = vmatpush.msra.mxu0 %v80
    %2072 = vmatpush.msra.mxu0 %v79
    %2073 = vmatpush.msra.mxu0 %v78
    %2074 = vmatpush.msra.mxu0 %v77
    %2075 = vmatmul.f32.gmra.mxu0 %v2057
    %v2076 = vpop.f32.mrf.mxu0
    %v2077 = vadd.f32 0.0, %v2076
    %2078 = vdwg.mxu0
    %v2079 = vadd.f32 %v2055, %v2077
    %v2080 = vmul.f32 %v2079, %v94
    %v2081 = vxor.u32 %v2080, 2147483648
    %v2082 = vmul.f32 %v2081, 1.442695
    %v2083 = vpow.pop %v2082
    %v2084 = vadd.f32 %v2083, 1.0
    %v2085 = vrcp.pop %v2084
    %v2086 = vmul.f32 %v2084, %v2085
    %v2087 = vsub.f32 1.0, %v2086
    %v2088 = vmul.f32 %v2085, %v2087
    %v2089 = vadd.f32 %v2085, %v2088
    %vm2090 = vweird.f32 %v2084
    %vm2091 = vweird.f32 %v2085
    %vm2092 = vmor %vm2090, %vm2091
    %v2093 = vsel %vm2092, %v2085, %v2089
    %v2094 = vand.u32 2147483647, %v2084
    %vm2095 = vcmp.eq.f32.partialorder %v2094, 8.507059e+37
    %v2096 = vand.u32 %v2084, 2147483648
    %v2097 = vor.u32 1.1754944e-38, %v2096
    %v2098 = vsel %vm2095, %v2097, %v2093
    %v2099 = vmul.f32 1.0, %v2098
    %v2100 = vmul.f32 %v2099, %v94
    %v2101 = vadd.f32 %v2100, %v95
    %v2102 = vmul.f32 %v2101, %v1924
    %2104 = vrot.lane.b32.xlu0 %v2101, 32
    %v2105 = vpop.permute.xlu0 %2104
    %v2107 = vmul.f32 %v2101, %v2105
    %2109 = vrot.lane.b32.xlu0 %v2107, 32
    %v2110 = vpop.permute.xlu0 %2109
    %v2112 = vadd.f32 %v2102, %v2110
    %v2113 = vtanh.pop %v2112
    %2115 = vrot.lane.b32.xlu0 %v2113, 32
    %v2116 = vpop.permute.xlu0 %2115
    %v2118 = vmul.f32 %v2101, %v2116
    %v2119 = vmul.f32 %v2118, %v1358
    %v2120 = vmul.f32 %v2033, %v1362
    %v2121 = vmul.f32 %v2040, %v1362
    %v2124 = vrot.slane %v2121, 7
    %v2125 = vsel %vm253, %v2124, %v2120
    %2126 = vrot.lane.b32.xlu0 %v2125, 64
    %v2127 = vpop.permute.xlu0 %2126
    %v2129 = vadd.f32 %v2119, %v2127
    %2131 = vrot.lane.b32.xlu0 %v2129, 64
    %v2132 = vpop.permute.xlu0 %2131
    %v2134 = vsel %vm1378, %v2132, 0.0
    %2135 = vadd.xlane.f32.xlu0 %v2134
    %v2136 = vpop.xlane.xlu0 %2135
    %v2137 = vadd.f32 %v2136, %v1383
    %v2139 = vrot.slane %v2118, 1
    %v2140 = vperm.slane %v2118, 0
    %v2141 = vperm.slane %v2139, 0
    %v2144 = vmul.f32 %v2140, %v1163
    %v2145 = vmul.f32 %v2141, %v1165
    %2148 = vrot.lane.b32.xlu0 %v2144, 64
    %v2149 = vpop.permute.xlu0 %2148
    %2150 = vrot.lane.b32.xlu0 %v2145, 64
    %v2151 = vpop.permute.xlu0 %2150
    %v2154 = vsel %vm133, %v2149, 0.0
    %2155 = vadd.xlane.f32.xlu0 %v2154
    %v2156 = vpop.xlane.xlu0 %2155
    %v2157 = vsel %vm133, %v2151, 0.0
    %2158 = vadd.xlane.f32.xlu0 %v2157
    %v2159 = vpop.xlane.xlu0 %2158
    %v2162 = vperm.slane %v2156, %v92
    %v2163 = vperm.slane %v2159, %v92
    %v2164 = vsel %vm253, %v2163, %v2162
    %v2166 = vsel %vm1190, %v2164, -inf
    %2167 = vmax.xlane.f32.xlu0 %v2166
    %v2168 = vpop.xlane.xlu0 %2167
    %v2170 = vperm.slane %v2168, 0
    %v2171 = vperm.slane %v2168, 1
    %v2174 = vsub.f32 %v2156, %v2170
    %v2175 = vsub.f32 %v2159, %v2171
    %v2176 = vmul.f32 %v2174, 1.442695
    %v2177 = vpow.pop %v2176
    %v2178 = vmul.f32 %v2175, 1.442695
    %v2179 = vpow.pop %v2178
    %2182 = vset.pattern.permute.xlu0 0
    %2183 = vperm.xlu0 %2182, %v2177
    %v2184 = vpop.permute.xlu0 %2183
    %2185 = vset.pattern.permute.xlu0 0
    %2186 = vperm.xlu0 %2185, %v2179
    %v2187 = vpop.permute.xlu0 %2186
    %v2188 = vperm.slane %v2184, %v92
    %v2189 = vperm.slane %v2187, %v92
    %v2190 = vsel %vm253, %v2189, %v2188
    %v2192 = vsel %vm1190, %v2190, 0.0
    %2193 = vadd.xlane.f32.xlu0 %v2192
    %v2194 = vpop.xlane.xlu0 %2193
    %v2195 = vrcp.pop %v2194
    %v2197 = vperm.slane %v2195, 0
    %v2198 = vperm.slane %v2195, 1
    %v2201 = vmul.f32 %v2177, %v2197
    %v2202 = vmul.f32 %v2179, %v2198
    %2204 = vset.pattern.permute.xlu0 0
    %2205 = vperm.xlu0 %2204, %v2201
    %v2206 = vpop.permute.xlu0 %2205
    %2209 = vset.pattern.permute.xlu0 0
    %2210 = vperm.xlu0 %2209, %v2202
    %v2211 = vpop.permute.xlu0 %2210
    %v2213 = vmul.f32 %v2206, %v1153
    %v2214 = vmul.f32 %v2211, %v1154
    %v2215 = vsel %vm133, %v2213, 0.0
    %v2216 = vrot.slane %v2215, 4
    %v2217 = vadd.f32 %v2215, %v2216
    %v2218 = vrot.slane %v2217, 2
    %v2219 = vadd.f32 %v2217, %v2218
    %v2220 = vrot.slane %v2219, 1
    %v2221 = vadd.f32 %v2219, %v2220
    %v2222 = vsel %vm133, %v2214, 0.0
    %v2223 = vrot.slane %v2222, 4
    %v2224 = vadd.f32 %v2222, %v2223
    %v2225 = vrot.slane %v2224, 2
    %v2226 = vadd.f32 %v2224, %v2225
    %v2227 = vrot.slane %v2226, 1
    %v2228 = vadd.f32 %v2226, %v2227
    %v2231 = vsel %vm253, %v2228, %v2221
    %2233 = vrot.lane.b32.xlu0 %v2118, 96
    %v2234 = vpop.permute.xlu0 %2233
    %v2236 = vsel %vm133, %v2231, %v2234
    %2238 = vset.pattern.permute.xlu0 0
    %2239 = vperm.xlu0 %2238, %v2137
    %v2240 = vpop.permute.xlu0 %2239
    %v2242 = vmul.f32 %v2240, %v1274
    %v2243 = vadd.f32 %v1156, %v2242
    %v2245 = vsel %vm1285, %v2236, 0
    %2247 = vmatpush.msra.mxu0 0.0
    %2248 = vmatpush.msra.mxu0 0.0
    %2249 = vmatpush.msra.mxu0 0.0
    %2250 = vmatpush.msra.mxu0 0.0
    %2251 = vmatpush.msra.mxu0 0.0
    %2252 = vmatpush.msra.mxu0 0.0
    %2253 = vmatpush.msra.mxu0 0.0
    %2254 = vmatpush.msra.mxu0 0.0
    %2255 = vmatpush.msra.mxu0 %v84
    %2256 = vmatpush.msra.mxu0 %v83
    %2257 = vmatpush.msra.mxu0 %v82
    %2258 = vmatpush.msra.mxu0 %v81
    %2259 = vmatpush.msra.mxu0 %v80
    %2260 = vmatpush.msra.mxu0 %v79
    %2261 = vmatpush.msra.mxu0 %v78
    %2262 = vmatpush.msra.mxu0 %v77
    %2263 = vmatmul.f32.gmra.mxu0 %v2245
    %v2264 = vpop.f32.mrf.mxu0
    %v2265 = vadd.f32 0.0, %v2264
    %2266 = vdwg.mxu0
    %v2267 = vadd.f32 %v2243, %v2265
    %v2268 = vmul.f32 %v2267, %v94
    %v2269 = vxor.u32 %v2268, 2147483648
    %v2270 = vmul.f32 %v2269, 1.442695
    %v2271 = vpow.pop %v2270
    %v2272 = vadd.f32 %v2271, 1.0
    %v2273 = vrcp.pop %v2272
    %v2274 = vmul.f32 %v2272, %v2273
    %v2275 = vsub.f32 1.0, %v2274
    %v2276 = vmul.f32 %v2273, %v2275
    %v2277 = vadd.f32 %v2273, %v2276
    %vm2278 = vweird.f32 %v2272
    %vm2279 = vweird.f32 %v2273
    %vm2280 = vmor %vm2278, %vm2279
    %v2281 = vsel %vm2280, %v2273, %v2277
    %v2282 = vand.u32 2147483647, %v2272
    %vm2283 = vcmp.eq.f32.partialorder %v2282, 8.507059e+37
    %v2284 = vand.u32 %v2272, 2147483648
    %v2285 = vor.u32 1.1754944e-38, %v2284
    %v2286 = vsel %vm2283, %v2285, %v2281
    %v2287 = vmul.f32 1.0, %v2286
    %v2288 = vmul.f32 %v2287, %v94
    %v2289 = vadd.f32 %v2288, %v95
    %v2290 = vmul.f32 %v2289, %v2112
    %2292 = vrot.lane.b32.xlu0 %v2289, 32
    %v2293 = vpop.permute.xlu0 %2292
    %v2295 = vmul.f32 %v2289, %v2293
    %2297 = vrot.lane.b32.xlu0 %v2295, 32
    %v2298 = vpop.permute.xlu0 %2297
    %v2300 = vadd.f32 %v2290, %v2298
    %v2301 = vtanh.pop %v2300
    %2303 = vrot.lane.b32.xlu0 %v2301, 32
    %v2304 = vpop.permute.xlu0 %2303
    %v2306 = vmul.f32 %v2289, %v2304
    %v2307 = vmul.f32 %v2306, %v1358
    %v2308 = vmul.f32 %v2221, %v1362
    %v2309 = vmul.f32 %v2228, %v1362
    %v2312 = vrot.slane %v2309, 7
    %v2313 = vsel %vm253, %v2312, %v2308
    %2314 = vrot.lane.b32.xlu0 %v2313, 64
    %v2315 = vpop.permute.xlu0 %2314
    %v2317 = vadd.f32 %v2307, %v2315
    %2319 = vrot.lane.b32.xlu0 %v2317, 64
    %v2320 = vpop.permute.xlu0 %2319
    %v2322 = vsel %vm1378, %v2320, 0.0
    %2323 = vadd.xlane.f32.xlu0 %v2322
    %v2324 = vpop.xlane.xlu0 %2323
    %v2325 = vadd.f32 %v2324, %v1383
    %2326 = vrot.lane.b32.xlu0 %v1573, 1
    %v2327 = vpop.permute.xlu0 %2326
    %2329 = vrot.lane.b32.xlu0 %v1761, 2
    %v2330 = vpop.permute.xlu0 %2329
    %2332 = vrot.lane.b32.xlu0 %v1949, 3
    %v2333 = vpop.permute.xlu0 %2332
    %2335 = vrot.lane.b32.xlu0 %v2137, 4
    %v2336 = vpop.permute.xlu0 %2335
    %2339 = vrot.lane.b32.xlu0 %v2325, 5
    %v2340 = vpop.permute.xlu0 %2339
    %vm2342 = vcmask 7168
    %v2343 = vsel %vm2342, %v1385, %v2327
    %vm2344 = vcmask 15360
    %v2345 = vsel %vm2344, %v2343, %v2330
    %vm2346 = vcmask 23552
    %v2347 = vsel %vm2346, %v2345, %v2333
    %v2348 = vsel %vm99, %v2347, %v2336
    %vm2349 = vcmask 39936
    %v2350 = vsel %vm2349, %v2348, %v2340
    %vm2351 = vcmask 41984
    %2352 = vst.msk [vmem:[#allocation9] sm:$0x3] %vm2351, %v2350
    // Predicated region
    $region50: #{seq2seq_forward.1} parent=1 // pred_check
      _
    $region51: #{seq2seq_forward.1} parent=1 // pred_check_branch
      %2354 = sbr.rel (0) target = $region53
    $region52: #{seq2seq_forward.1} parent=1 // pred_region
      %2356 = vsyncadd [#allocation6], 0
      %s2358 = sshll.u32 [#allocation9], 4
      %s2359 = int_to_ptr.vmem [resolvable:$true] %s2358
      %s2360 = sshll.u32 %s10, 4
      %s2361 = int_to_ptr.hbm [resolvable:$true] %s2360
      %2363 = dma.vmem_to_hbm [thread:$0]  %s2359, 32, %s2361, [#allocation6]
    $region53: #{seq2seq_forward.1} parent=1 // pred_fallthru
      _
    // Predicated region
    $region54: #{seq2seq_forward.1} parent=1 // pred_check
      _
    $region55: #{seq2seq_forward.1} parent=1 // pred_check_branch
      %2365 = sbr.rel (0) target = $region57
    $region56: #{seq2seq_forward.1} parent=1 // pred_region
      %2367 = dma.done [#allocation6], 32
    $region57: #{seq2seq_forward.1} parent=1 // pred_fallthru
      _
    %2368 = vsyncpa [#allocation5], 1
    %2369 = vsyncpa [#allocation8], 1
    %2370 = vsyncpa [#allocation6], 1

</llo_original>
